<compile_context>
chip_gen: v6e
topology: v6e:2x2x1
jax: 0.10.0
libtpu: 0.0.40
codegen_flags: <defaults>
</compile_context>

<pallas_src>
import functools

import jax
import jax.numpy as jnp
from jax import lax
from jax.experimental import pallas as pl
from jax.experimental.pallas import tpu as pltpu

NEG_SLOPE = 0.01  # F.leaky_relu default negative slope


def _attention_kernel(q_ref, ctx_ref, wqT_ref, wcT_ref, bw_ref, swl_ref,
                      swr_ref, *refs, write_attn):
    """One grid step over TB batches.

    q_ref   : (TB, Q, H)   query tile
    ctx_ref : (TB, C, H)   context tile (natural layout, H on lanes)
    wqT_ref : (H, H)       Wq^T  (so q @ WqT == q @ Wq.T)
    wcT_ref : (H, H)       Wc^T
    bw_ref  : (1, H)       bias of W
    swl_ref : (1, H)       NEG_SLOPE * score weight        (linear part)
    swr_ref : (1, H)       (1 - NEG_SLOPE) * score weight  (relu part)
    out_ref : (TB, Q, H)   attn_output
    attn_ref: (TB, Q, C)   attention weights (only if write_attn)
    qh_scr  : (TB, Q, H)   VMEM scratch: batched query projection
    ch_scr  : (TB, C, H)   VMEM scratch: batched context projection
    """
    if write_attn:
        out_ref, attn_ref, qh_scr, ch_scr = refs
    else:
        out_ref, qh_scr, ch_scr = refs
        attn_ref = None

    tb, q_len, h = q_ref.shape
    c_len = ctx_ref.shape[1]

    # ---- Projections batched across the TB block (one MXU matmul each). ----
    q2 = q_ref[...].reshape(tb * q_len, h)
    qh2 = jnp.dot(q2, wqT_ref[...], preferred_element_type=jnp.float32)
    qh_scr[...] = (qh2 + bw_ref[...]).reshape(tb, q_len, h)

    c2 = ctx_ref[...].reshape(tb * c_len, h)
    ch2 = jnp.dot(c2, wcT_ref[...], preferred_element_type=jnp.float32)
    ch_scr[...] = ch2.reshape(tb, c_len, h)

    swl = swl_ref[...]             # (1, H)
    w2 = swr_ref[...][None]        # (1, 1, H)

    # ---- Per-batch score/softmax/mix; fori_loop bounds the (Q,C,H) live range.
    def body(b, carry):
        qh = qh_scr[b]             # (Q, H)
        ch = ch_scr[b]             # (C, H)
        ct = ctx_ref[b]            # (C, H) raw context for the mix

        # Hot tensor (Q, C, H), hidden dim on lanes: add + relu + weighted acc.
        x = qh[:, None, :] + ch[None, :, :]
        score = jnp.sum(jnp.maximum(x, 0.0) * w2, axis=-1)          # (Q, C)

        # Linear (slope) part of leaky_relu from the small (C, H) tensor only.
        # The per-query linear term and the score bias are constant along the
        # context axis, so they cancel in the softmax and are skipped.
        lin_c = lax.dot_general(swl, ch, (((1,), (1,)), ((), ())),
                                preferred_element_type=jnp.float32)  # (1, C)
        score = score + lin_c

        # Numerically stable softmax over the context axis (lanes).
        m = jnp.max(score, axis=-1, keepdims=True)
        e = jnp.exp(score - m)
        denom = jnp.sum(e, axis=-1, keepdims=True)
        attn = e * pl.reciprocal(denom, approx=True)                 # (Q, C)

        if write_attn:
            attn_ref[b] = attn.astype(attn_ref.dtype)
        # mix: attn @ context, natural MXU orientation (no transpose needed).
        out_ref[b] = jnp.dot(attn, ct, preferred_element_type=jnp.float32
                             ).astype(out_ref.dtype)
        return carry

    lax.fori_loop(0, tb, body, 0)


def _plan(B, Q, C, H, *, write_attn):
    """Pick the per-step batch tile TB and an explicit scoped-VMEM limit."""
    try:
        vmem_cap = int(pltpu.get_tpu_info().vmem_capacity_bytes)
    except Exception:
        vmem_cap = 64 * 1024 * 1024  # conservative: v7x per-TensorCore VMEM

    # <= ~40-48 MiB working set on v7x; proportionally less elsewhere.
    budget = min(int(0.60 * vmem_cap), 48 * 1024 * 1024)

    def step_bytes(tb):
        in_blocks = 2 * 4 * tb * (Q * H + C * H)                    # double-buffered
        out_blocks = 2 * 4 * tb * (Q * H + (Q * C if write_attn else 0))
        scratch = 4 * tb * (Q * H + C * H)                          # projection staging
        hot = 3 * 4 * Q * C * H                                     # one batch live
        return in_blocks + out_blocks + scratch + hot + (1 << 20)   # slop for weights

    divisors = [t for t in range(1, B + 1) if B % t == 0]
    fits = [t for t in divisors if step_bytes(t) <= budget] or [1]
    # Prefer grid lengths that are a multiple of 2 (keep both v7x TensorCores
    # busy on the "parallel" axis), then the largest TB that fits (amortizes
    # the ~0.35us per-grid-step overhead).
    even = [t for t in fits if (B // t) % 2 == 0]
    tb = max(even) if even else max(fits)

    vmem_limit = int(min(0.75 * vmem_cap,
                         max(32 * 1024 * 1024, 1.25 * step_bytes(tb))))
    return tb, vmem_limit


def attention_forward(query, context, w_weight, w_bias, s_weight, s_bias, *,
                      tb=None, return_attn=True):
    """query (B,Q,H), context (B,C,H) -> (attn_output (B,Q,H), attn (B,Q,C))."""
    query = query.astype(jnp.float32)
    context = context.astype(jnp.float32)
    B, Q, H = query.shape
    Bc, C, Hc = context.shape
    assert Bc == B and Hc == H

    # One-time (XLA-side) weight preprocessing; context stays untransposed.
    wqT = jnp.transpose(w_weight[:, :H]).astype(jnp.float32)       # (H, H)
    wcT = jnp.transpose(w_weight[:, H:]).astype(jnp.float32)       # (H, H)
    bw = w_bias.reshape(1, H).astype(jnp.float32)                  # (1, H)
    sw = s_weight.reshape(1, H).astype(jnp.float32)
    sw_lin = NEG_SLOPE * sw                                        # linear part
    sw_relu = (1.0 - NEG_SLOPE) * sw                               # relu part
    del s_bias  # constant along the context axis -> cancels in the softmax

    planned_tb, vmem_limit = _plan(B, Q, C, H, write_attn=return_attn)
    if tb is None:
        tb = planned_tb
    assert B % tb == 0, "batch must be divisible by the per-step batch tile"
    grid = (B // tb,)

    out_shapes = [jax.ShapeDtypeStruct((B, Q, H), jnp.float32)]
    out_specs = [pl.BlockSpec((tb, Q, H), lambda g: (g, 0, 0))]
    if return_attn:
        out_shapes.append(jax.ShapeDtypeStruct((B, Q, C), jnp.float32))
        out_specs.append(pl.BlockSpec((tb, Q, C), lambda g: (g, 0, 0)))

    results = pl.pallas_call(
        functools.partial(_attention_kernel, write_attn=return_attn),
        out_shape=tuple(out_shapes),
        grid_spec=pltpu.PrefetchScalarGridSpec(
            num_scalar_prefetch=0,
            grid=grid,
            in_specs=[
                pl.BlockSpec((tb, Q, H), lambda g: (g, 0, 0)),
                pl.BlockSpec((tb, C, H), lambda g: (g, 0, 0)),
                pl.BlockSpec((H, H), lambda g: (0, 0)),
                pl.BlockSpec((H, H), lambda g: (0, 0)),
                pl.BlockSpec((1, H), lambda g: (0, 0)),
                pl.BlockSpec((1, H), lambda g: (0, 0)),
                pl.BlockSpec((1, H), lambda g: (0, 0)),
            ],
            out_specs=tuple(out_specs),
            scratch_shapes=[
                pltpu.VMEM((tb, Q, H), jnp.float32),
                pltpu.VMEM((tb, C, H), jnp.float32),
            ],
        ),
        compiler_params=pltpu.CompilerParams(
            dimension_semantics=("parallel",),
            vmem_limit_bytes=vmem_limit,
        ),
    )(query, context, wqT, wcT, bw, sw_lin, sw_relu)

    if return_attn:
        out, attn = results
        return out, attn
    out = results[0] if isinstance(results, (tuple, list)) else results
    return out, None


def _reference(query, context, w_weight, w_bias, s_weight, s_bias):
    B, Q, H = query.shape
    C = context.shape[1]
    qc_q = jnp.broadcast_to(query[:, :, None, :], (B, Q, C, H))
    qc_c = jnp.broadcast_to(context[:, None, :, :], (B, Q, C, H))
    cat = jnp.concatenate([qc_q, qc_c], axis=-1)                   # (B,Q,C,2H)
    hid = cat @ w_weight.T + w_bias
    hid = jnp.where(hid > 0, hid, NEG_SLOPE * hid)
    score = (hid @ s_weight.T + s_bias).reshape(B, Q, C)
    attn = jax.nn.softmax(score, axis=-1)
    out = jnp.einsum("bqc,bch->bqh", attn, context)
    return out, attn


if __name__ == "__main__":
    key = jax.random.PRNGKey(0)
    B, Q, C, H = 2, 8, 16, 32
    k1, k2, k3, k4, k5, k6 = jax.random.split(key, 6)

    query = jax.random.normal(k1, (B, Q, H), dtype=jnp.float32)
    context = jax.random.normal(k2, (B, C, H), dtype=jnp.float32)

    # Deterministic params (shapes per nn.Linear(2H, H) and nn.Linear(H, 1)).
    w_weight = jax.random.normal(k3, (H, 2 * H), dtype=jnp.float32) * 0.3
    w_bias = jax.random.normal(k4, (H,), dtype=jnp.float32) * 0.3
    s_weight = jax.random.normal(k5, (1, H), dtype=jnp.float32) * 0.3
    s_bias = jax.random.normal(k6, (1,), dtype=jnp.float32) * 0.3

    out, attn = attention_forward(query, context, w_weight, w_bias,
                                  s_weight, s_bias)
    out, attn = jax.block_until_ready((out, attn))

    ref_out, ref_attn = _reference(query, context, w_weight, w_bias,
                                   s_weight, s_bias)
    # approx-reciprocal softmax normalization perturbs low bits -> 2e-3 tol.
    assert jnp.allclose(out, ref_out, atol=2e-3, rtol=2e-3), (
        "attn_output mismatch, max abs err = %g"
        % float(jnp.max(jnp.abs(out - ref_out))))
    assert jnp.allclose(attn, ref_attn, atol=2e-3, rtol=2e-3), (
        "attn mismatch, max abs err = %g"
        % float(jnp.max(jnp.abs(attn - ref_attn))))

    print("KERNEL_OK")
</pallas_src>

<mosaic_0001>
module attributes {stable_mosaic.version = 11 : i64} {
  func.func @_attention_kernel(%arg0: i32, %arg1: memref<1x8x32xf32, #tpu.memory_space<vmem>>, %arg2: memref<1x16x32xf32, #tpu.memory_space<vmem>>, %arg3: memref<32x32xf32, #tpu.memory_space<vmem>>, %arg4: memref<32x32xf32, #tpu.memory_space<vmem>>, %arg5: memref<1x32xf32, #tpu.memory_space<vmem>>, %arg6: memref<1x32xf32, #tpu.memory_space<vmem>>, %arg7: memref<1x32xf32, #tpu.memory_space<vmem>>, %arg8: memref<1x8x32xf32, #tpu.memory_space<vmem>>, %arg9: memref<1x8x16xf32, #tpu.memory_space<vmem>>, %arg10: memref<1x8x32xf32, #tpu.memory_space<vmem>>, %arg11: memref<1x16x32xf32, #tpu.memory_space<vmem>>) attributes {dimension_semantics = [#tpu.dimension_semantics<parallel>], iteration_bounds = array<i64: 2>, scalar_prefetch = 0 : i64, scratch_operands = 2 : i64, tpu.core_type = #tpu.core_type<tc>, window_params = [{transform_indices = @transform_0, window_bounds = array<i64: 1, 8, 32>}, {transform_indices = @transform_1, window_bounds = array<i64: 1, 16, 32>}, {pipeline_mode = #tpu.pipeline_mode<synchronous>, transform_indices = @transform_2, window_bounds = array<i64: 32, 32>}, {pipeline_mode = #tpu.pipeline_mode<synchronous>, transform_indices = @transform_3, window_bounds = array<i64: 32, 32>}, {pipeline_mode = #tpu.pipeline_mode<synchronous>, transform_indices = @transform_4, window_bounds = array<i64: 1, 32>}, {pipeline_mode = #tpu.pipeline_mode<synchronous>, transform_indices = @transform_5, window_bounds = array<i64: 1, 32>}, {pipeline_mode = #tpu.pipeline_mode<synchronous>, transform_indices = @transform_6, window_bounds = array<i64: 1, 32>}, {transform_indices = @transform_7, window_bounds = array<i64: 1, 8, 32>}, {transform_indices = @transform_8, window_bounds = array<i64: 1, 8, 16>}]} {
    %c0 = arith.constant 0 : index
    %c0_0 = arith.constant 0 : index
    %c0_1 = arith.constant 0 : index
    %0 = vector.load %arg1[%c0, %c0_0, %c0_1] : memref<1x8x32xf32, #tpu.memory_space<vmem>>, vector<1x8x32xf32>
    %1 = vector.shape_cast %0 : vector<1x8x32xf32> to vector<8x32xf32>
    %c0_2 = arith.constant 0 : index
    %c0_3 = arith.constant 0 : index
    %2 = vector.load %arg3[%c0_2, %c0_3] : memref<32x32xf32, #tpu.memory_space<vmem>>, vector<32x32xf32>
    %cst = arith.constant dense<0.000000e+00> : vector<8x32xf32>
    %3 = tpu.matmul %1, %2, %cst {dimension_numbers = #tpu.dot_dimension_numbers<[1], [0], [0], [1], [0, 0, 1, 1], [], []>} : vector<8x32xf32>, vector<32x32xf32>, vector<8x32xf32> -> vector<8x32xf32>
    %c0_4 = arith.constant 0 : index
    %c0_5 = arith.constant 0 : index
    %4 = vector.load %arg5[%c0_4, %c0_5] : memref<1x32xf32, #tpu.memory_space<vmem>>, vector<1x32xf32>
    %5 = vector.broadcast %4 : vector<1x32xf32> to vector<8x32xf32>
    %6 = arith.addf %3, %5 : vector<8x32xf32>
    %7 = vector.shape_cast %6 : vector<8x32xf32> to vector<1x8x32xf32>
    %c0_6 = arith.constant 0 : index
    %c0_7 = arith.constant 0 : index
    %c0_8 = arith.constant 0 : index
    %8 = vector.load %arg10[%c0_6, %c0_7, %c0_8] : memref<1x8x32xf32, #tpu.memory_space<vmem>>, vector<1x8x32xf32>
    tpu.vector_store %arg10[%c0_6, %c0_7, %c0_8], %7 {strides = array<i32>} : memref<1x8x32xf32, #tpu.memory_space<vmem>>, vector<1x8x32xf32>,
    %c0_9 = arith.constant 0 : index
    %c0_10 = arith.constant 0 : index
    %c0_11 = arith.constant 0 : index
    %9 = vector.load %arg2[%c0_9, %c0_10, %c0_11] : memref<1x16x32xf32, #tpu.memory_space<vmem>>, vector<1x16x32xf32>
    %10 = vector.shape_cast %9 : vector<1x16x32xf32> to vector<16x32xf32>
    %c0_12 = arith.constant 0 : index
    %c0_13 = arith.constant 0 : index
    %11 = vector.load %arg4[%c0_12, %c0_13] : memref<32x32xf32, #tpu.memory_space<vmem>>, vector<32x32xf32>
    %cst_14 = arith.constant dense<0.000000e+00> : vector<16x32xf32>
    %12 = tpu.matmul %10, %11, %cst_14 {dimension_numbers = #tpu.dot_dimension_numbers<[1], [0], [0], [1], [0, 0, 1, 1], [], []>} : vector<16x32xf32>, vector<32x32xf32>, vector<16x32xf32> -> vector<16x32xf32>
    %13 = vector.shape_cast %12 : vector<16x32xf32> to vector<1x16x32xf32>
    %c0_15 = arith.constant 0 : index
    %c0_16 = arith.constant 0 : index
    %c0_17 = arith.constant 0 : index
    %14 = vector.load %arg11[%c0_15, %c0_16, %c0_17] : memref<1x16x32xf32, #tpu.memory_space<vmem>>, vector<1x16x32xf32>
    tpu.vector_store %arg11[%c0_15, %c0_16, %c0_17], %13 {strides = array<i32>} : memref<1x16x32xf32, #tpu.memory_space<vmem>>, vector<1x16x32xf32>,
    %c0_18 = arith.constant 0 : index
    %c0_19 = arith.constant 0 : index
    %15 = vector.load %arg6[%c0_18, %c0_19] : memref<1x32xf32, #tpu.memory_space<vmem>>, vector<1x32xf32>
    %c0_20 = arith.constant 0 : index
    %c0_21 = arith.constant 0 : index
    %16 = vector.load %arg7[%c0_20, %c0_21] : memref<1x32xf32, #tpu.memory_space<vmem>>, vector<1x32xf32>
    %17 = vector.shape_cast %16 : vector<1x32xf32> to vector<1x1x32xf32>
    %c0_i32 = arith.constant 0 : i32
    %18 = arith.index_cast %c0_i32 : i32 to index
    %c0_22 = arith.constant 0 : index
    %c0_23 = arith.constant 0 : index
    %19 = vector.load %arg10[%18, %c0_22, %c0_23] : memref<1x8x32xf32, #tpu.memory_space<vmem>>, vector<1x8x32xf32>
    %20 = vector.shape_cast %19 : vector<1x8x32xf32> to vector<8x32xf32>
    %21 = arith.index_cast %c0_i32 : i32 to index
    %c0_24 = arith.constant 0 : index
    %c0_25 = arith.constant 0 : index
    %22 = vector.load %arg11[%21, %c0_24, %c0_25] : memref<1x16x32xf32, #tpu.memory_space<vmem>>, vector<1x16x32xf32>
    %23 = vector.shape_cast %22 : vector<1x16x32xf32> to vector<16x32xf32>
    %24 = arith.index_cast %c0_i32 : i32 to index
    %c0_26 = arith.constant 0 : index
    %c0_27 = arith.constant 0 : index
    %25 = vector.load %arg2[%24, %c0_26, %c0_27] : memref<1x16x32xf32, #tpu.memory_space<vmem>>, vector<1x16x32xf32>
    %26 = vector.shape_cast %25 : vector<1x16x32xf32> to vector<16x32xf32>
    %27 = vector.shape_cast %20 : vector<8x32xf32> to vector<8x1x32xf32>
    %28 = vector.shape_cast %23 : vector<16x32xf32> to vector<1x16x32xf32>
    %29 = vector.broadcast %27 : vector<8x1x32xf32> to vector<8x16x32xf32>
    %30 = vector.broadcast %28 : vector<1x16x32xf32> to vector<8x16x32xf32>
    %31 = arith.addf %29, %30 : vector<8x16x32xf32>
    %cst_28 = arith.constant 0.000000e+00 : f32
    %32 = vector.broadcast %cst_28 : f32 to vector<8x16x32xf32>
    %33 = arith.maximumf %31, %32 : vector<8x16x32xf32>
    %34 = vector.broadcast %17 : vector<1x1x32xf32> to vector<8x16x32xf32>
    %35 = arith.mulf %33, %34 : vector<8x16x32xf32>
    %cst_29 = arith.constant dense<0.000000e+00> : vector<8x16xf32>
    %36 = vector.multi_reduction <add>, %35, %cst_29 [2] : vector<8x16x32xf32> to vector<8x16xf32>
    %cst_30 = arith.constant dense<0.000000e+00> : vector<1x16xf32>
    %37 = tpu.matmul %15, %23, %cst_30 {dimension_numbers = #tpu.dot_dimension_numbers<[1], [1], [0], [0], [0, 0, 1, 0], [], []>} : vector<1x32xf32>, vector<16x32xf32>, vector<1x16xf32> -> vector<1x16xf32>
    %38 = vector.broadcast %37 : vector<1x16xf32> to vector<8x16xf32>
    %39 = arith.addf %36, %38 : vector<8x16xf32>
    %cst_31 = arith.constant dense<0xFF800000> : vector<8xf32>
    %40 = vector.multi_reduction <maximumf>, %39, %cst_31 [1] : vector<8x16xf32> to vector<8xf32>
    %41 = vector.shape_cast %40 : vector<8xf32> to vector<8x1xf32>
    %42 = vector.broadcast %41 : vector<8x1xf32> to vector<8x16xf32>
    %43 = arith.subf %39, %42 : vector<8x16xf32>
    %44 = math.exp %43 : vector<8x16xf32>
    %cst_32 = arith.constant dense<0.000000e+00> : vector<8xf32>
    %45 = vector.multi_reduction <add>, %44, %cst_32 [1] : vector<8x16xf32> to vector<8xf32>
    %46 = vector.shape_cast %45 : vector<8xf32> to vector<8x1xf32>
    %47 = tpu.reciprocal %46 {approx = true} : vector<8x1xf32> -> vector<8x1xf32>
    %48 = vector.broadcast %47 : vector<8x1xf32> to vector<8x16xf32>
    %49 = arith.mulf %44, %48 : vector<8x16xf32>
    %50 = arith.index_cast %c0_i32 : i32 to index
    %c0_33 = arith.constant 0 : index
    %c0_34 = arith.constant 0 : index
    %51 = vector.load %arg9[%50, %c0_33, %c0_34] : memref<1x8x16xf32, #tpu.memory_space<vmem>>, vector<1x8x16xf32>
    %52 = vector.shape_cast %51 : vector<1x8x16xf32> to vector<8x16xf32>
    %53 = vector.shape_cast %49 : vector<8x16xf32> to vector<1x8x16xf32>
    tpu.vector_store %arg9[%50, %c0_33, %c0_34], %53 {strides = array<i32>} : memref<1x8x16xf32, #tpu.memory_space<vmem>>, vector<1x8x16xf32>,
    %cst_35 = arith.constant dense<0.000000e+00> : vector<8x32xf32>
    %54 = tpu.matmul %49, %26, %cst_35 {dimension_numbers = #tpu.dot_dimension_numbers<[1], [0], [0], [1], [0, 0, 1, 1], [], []>} : vector<8x16xf32>, vector<16x32xf32>, vector<8x32xf32> -> vector<8x32xf32>
    %55 = arith.index_cast %c0_i32 : i32 to index
    %c0_36 = arith.constant 0 : index
    %c0_37 = arith.constant 0 : index
    %56 = vector.load %arg8[%55, %c0_36, %c0_37] : memref<1x8x32xf32, #tpu.memory_space<vmem>>, vector<1x8x32xf32>
    %57 = vector.shape_cast %56 : vector<1x8x32xf32> to vector<8x32xf32>
    %58 = vector.shape_cast %54 : vector<8x32xf32> to vector<1x8x32xf32>
    tpu.vector_store %arg8[%55, %c0_36, %c0_37], %58 {strides = array<i32>} : memref<1x8x32xf32, #tpu.memory_space<vmem>>, vector<1x8x32xf32>,
    %c1_i32 = arith.constant 1 : i32
    return
  }
  func.func @transform_0(%arg0: i32) -> (i32, i32, i32) {
    %c0_i32 = arith.constant 0 : i32
    %c0_i32_0 = arith.constant 0 : i32
    %c0_i32_1 = arith.constant 0 : i32
    return %arg0, %c0_i32, %c0_i32_0 : i32, i32, i32
  }
  func.func @transform_1(%arg0: i32) -> (i32, i32, i32) {
    %c0_i32 = arith.constant 0 : i32
    %c0_i32_0 = arith.constant 0 : i32
    %c0_i32_1 = arith.constant 0 : i32
    return %arg0, %c0_i32, %c0_i32_0 : i32, i32, i32
  }
  func.func @transform_2(%arg0: i32) -> (i32, i32) {
    %c0_i32 = arith.constant 0 : i32
    %c0_i32_0 = arith.constant 0 : i32
    %c0_i32_1 = arith.constant 0 : i32
    return %c0_i32, %c0_i32_0 : i32, i32
  }
  func.func @transform_3(%arg0: i32) -> (i32, i32) {
    %c0_i32 = arith.constant 0 : i32
    %c0_i32_0 = arith.constant 0 : i32
    %c0_i32_1 = arith.constant 0 : i32
    return %c0_i32, %c0_i32_0 : i32, i32
  }
  func.func @transform_4(%arg0: i32) -> (i32, i32) {
    %c0_i32 = arith.constant 0 : i32
    %c0_i32_0 = arith.constant 0 : i32
    %c0_i32_1 = arith.constant 0 : i32
    return %c0_i32, %c0_i32_0 : i32, i32
  }
  func.func @transform_5(%arg0: i32) -> (i32, i32) {
    %c0_i32 = arith.constant 0 : i32
    %c0_i32_0 = arith.constant 0 : i32
    %c0_i32_1 = arith.constant 0 : i32
    return %c0_i32, %c0_i32_0 : i32, i32
  }
  func.func @transform_6(%arg0: i32) -> (i32, i32) {
    %c0_i32 = arith.constant 0 : i32
    %c0_i32_0 = arith.constant 0 : i32
    %c0_i32_1 = arith.constant 0 : i32
    return %c0_i32, %c0_i32_0 : i32, i32
  }
  func.func @transform_7(%arg0: i32) -> (i32, i32, i32) {
    %c0_i32 = arith.constant 0 : i32
    %c0_i32_0 = arith.constant 0 : i32
    %c0_i32_1 = arith.constant 0 : i32
    return %arg0, %c0_i32, %c0_i32_0 : i32, i32, i32
  }
  func.func @transform_8(%arg0: i32) -> (i32, i32, i32) {
    %c0_i32 = arith.constant 0 : i32
    %c0_i32_0 = arith.constant 0 : i32
    %c0_i32_1 = arith.constant 0 : i32
    return %arg0, %c0_i32, %c0_i32_0 : i32, i32, i32
  }
}

</mosaic_0001>

<llo_original>
// kernel: tpu_custom_call.1
$region0: #{tpu_custom_call.1}
  #allocation0 [shape = 'u32[]', space=smem, size = 0x4, offset = 0x4, fixed_abs, tag = 'smem constant byte address 0x4 - core index']
  #allocation1 [shape = 'u32[144,128]{1,0:T(1,128)}', space=vmem, size = 0x12000, scoped, tag = 'internal scratch']
  #allocation2 [shape = 'f32[1,8,32]{2,1,0:T(8,128)}', space=vmem, size = 0x1000, scoped, tag = 'scratch operand']
  #allocation3 [shape = 'f32[1,16,32]{2,1,0:T(8,128)}', space=vmem, size = 0x2000, scoped, tag = 'scratch operand']
  %s0 = inlined_call_operand.hbm [shape: f32[2,8,32], index: 0, kind: input, shape index: {}]
  %s1 = inlined_call_operand.hbm [shape: f32[2,16,32], index: 1, kind: input, shape index: {}]
  %s2 = inlined_call_operand.hbm [shape: f32[32,32], index: 2, kind: input, shape index: {}]
  %s3 = inlined_call_operand.hbm [shape: f32[32,32], index: 3, kind: input, shape index: {}]
  %s4 = inlined_call_operand.vmem [shape: f32[1,32], index: 4, kind: input, shape index: {}]
  %s5 = inlined_call_operand.vmem [shape: f32[1,32], index: 5, kind: input, shape index: {}]
  %s6 = inlined_call_operand.vmem [shape: f32[1,32], index: 6, kind: input, shape index: {}]
  %s7 = inlined_call_operand.hbm [shape: f32[2,8,32], index: 7, kind: output, shape index: {0}]
  %s8 = inlined_call_operand.hbm [shape: f32[2,8,16], index: 8, kind: output, shape index: {1}]
  %9 = xla_tuple %s7, %s8
  %s10 = sld [smem:[#allocation0]]
  $region85: #{tpu_custom_call.1} parent=0
    _
  %s12 = ssub.s32 1, %s10
  %s13 = scalar_select 0, %s12, %s10
  $region1: #{tpu_custom_call.1} parent=0
    #allocation4 [shape = 'u8[8192]{0}', space=vmem, size = 0x2000, scoped, tag = 'input window, operand 0']
    #allocation5 [shape = 's32[2]{0}', space=sflag, size = 0x8, scoped, tag = 'scoped memory for tpu_custom_call.1']
    #allocation6 [shape = 's32[2]{0}', space=sflag, size = 0x8, scoped, tag = 'scoped memory for tpu_custom_call.1']
    #allocation7 [shape = 'u8[16384]{0}', space=vmem, size = 0x4000, scoped, tag = 'input window, operand 1']
    #allocation8 [shape = 's32[2]{0}', space=sflag, size = 0x8, scoped, tag = 'scoped memory for tpu_custom_call.1']
    #allocation9 [shape = 'u8[16384]{0}', space=vmem, size = 0x4000, scoped, tag = 'input window, operand 2, single buffered']
    #allocation10 [shape = 'u8[16384]{0}', space=vmem, size = 0x4000, scoped, tag = 'input window, operand 3, single buffered']
    #allocation11 [shape = 's32[1]{0}', space=sflag, size = 0x4, scoped, tag = 'scoped memory for tpu_custom_call.1']
    #allocation12 [shape = 'u8[8192]{0}', space=vmem, size = 0x2000, scoped, tag = 'output window, operand 0']
    #allocation13 [shape = 'u8[8192]{0}', space=vmem, size = 0x2000, scoped, tag = 'output window, operand 1']
    #allocation14 [shape = 's32[2]{0}', space=sflag, size = 0x8, scoped, tag = 'scoped memory for tpu_custom_call.1']
    %14 = vsyncpa [#allocation5], 0
    %s15 = scalar_lea.sflag [#allocation5], 1
    %16 = vsyncpa %s15, 0
    %17 = vsyncpa [#allocation8], 0
    %s18 = scalar_lea.sflag [#allocation8], 1
    %19 = vsyncpa %s18, 0
    %20 = vsyncpa [#allocation11], 0
    %21 = vsyncpa [#allocation6], 0
    %s22 = scalar_lea.sflag [#allocation6], 1
    %23 = vsyncpa %s22, 0
    %24 = vsyncpa [#allocation14], 0
    %s25 = scalar_lea.sflag [#allocation14], 1
    %26 = vsyncpa %s25, 0
    loop: start=0, step=1, limit=4
    $region2: #{tpu_custom_call.1} parent=1 // loop_pre_header
      _
    $region3: #{tpu_custom_call.1} parent=1 // loop_header
      %s28 = sphi 0, %s32
      %p29 = scmp.ge.s32.totalorder %s28, 4
      %s38 = sphi 0, %s40
      %s41 = sphi 0, %s38
      %s42 = sphi 0, %s41
      %s58 = sphi 0, %s42
      %s64 = sphi 0, %s66
      %s67 = sphi 0, %s64
      %s68 = sphi 0, %s67
      %s84 = sphi 0, %s68
      %s88 = sphi 0, %s88
      %s90 = sphi 0, %s88
      %s91 = sphi 0, %s90
      %s105 = sphi 0, %s91
      %s109 = sphi 0, %s109
      %s111 = sphi 0, %s109
      %s112 = sphi 0, %s111
      %s126 = sphi 0, %s112
      %s130 = sphi 0, %s130
      %s132 = sphi 0, %s130
      %s133 = sphi 0, %s132
      %s147 = sphi 0, %s133
      %s151 = sphi 0, %s151
      %s153 = sphi 0, %s151
      %s154 = sphi 0, %s153
      %s168 = sphi 0, %s154
      %s172 = sphi 0, %s172
      %s174 = sphi 0, %s172
      %s175 = sphi 0, %s174
      %s189 = sphi 0, %s175
      %s195 = sphi 0, %s197
      %s198 = sphi 0, %s195
      %s199 = sphi 0, %s198
      %s215 = sphi 0, %s199
      %s221 = sphi 0, %s223
      %s224 = sphi 0, %s221
      %s225 = sphi 0, %s224
      %s241 = sphi 0, %s225
    $region4: #{tpu_custom_call.1} parent=1 // loop_header_branch
      %31 = sbr.rel (%p29) target = $region8
    $region5: #{tpu_custom_call.1} parent=1 // loop_body
      %s33 = ssub.s32 %s28, 1
      %s34 = ssub.s32 %s28, 2
      %s35 = sadd.s32 %s28, 1
      %s36 = ssub.s32 %s28, %s35
      %p37 = scmp.eq.s32.totalorder %s36, 0
      %s39 = sadd.s32 %s38, 1
      %s40 = scalar_select %p37, %s38, %s39
      %p43 = pneg %p37
      %p44 = scmp.eq.s32.totalorder %s28, 1
      %p45 = por %p43, %p44
      %p46 = scmp.ne.s32.totalorder %s38, %s41
      %p47 = scmp.eq.s32.totalorder %s28, 0
      %p48 = por %p46, %p47
      %p49 = scmp.ne.s32.totalorder %s38, %s41
      %p50 = scmp.eq.s32.totalorder %s33, 1
      %p51 = por %p49, %p50
      %p52 = scmp.ne.s32.totalorder %s41, %s42
      %p53 = scmp.eq.s32.totalorder %s33, 0
      %p54 = por %p52, %p53
      %p55 = scmp.ne.s32.totalorder %s41, %s42
      %p56 = scmp.eq.s32.totalorder %s34, 1
      %p57 = por %p55, %p56
      %p59 = scmp.ne.s32.totalorder %s42, %s58
      %p60 = scmp.eq.s32.totalorder %s34, 0
      %p61 = por %p59, %p60
      %s62 = ssub.s32 %s28, %s35
      %p63 = scmp.eq.s32.totalorder %s62, 0
      %s65 = sadd.s32 %s64, 1
      %s66 = scalar_select %p63, %s64, %s65
      %p69 = pneg %p63
      %p70 = scmp.eq.s32.totalorder %s28, 1
      %p71 = por %p69, %p70
      %p72 = scmp.ne.s32.totalorder %s64, %s67
      %p73 = scmp.eq.s32.totalorder %s28, 0
      %p74 = por %p72, %p73
      %p75 = scmp.ne.s32.totalorder %s64, %s67
      %p76 = scmp.eq.s32.totalorder %s33, 1
      %p77 = por %p75, %p76
      %p78 = scmp.ne.s32.totalorder %s67, %s68
      %p79 = scmp.eq.s32.totalorder %s33, 0
      %p80 = por %p78, %p79
      %p81 = scmp.ne.s32.totalorder %s67, %s68
      %p82 = scmp.eq.s32.totalorder %s34, 1
      %p83 = por %p81, %p82
      %p85 = scmp.ne.s32.totalorder %s68, %s84
      %p86 = scmp.eq.s32.totalorder %s34, 0
      %p87 = por %p85, %p86
      %s89 = sadd.s32 %s88, 1
      %p92 = scmp.eq.s32.totalorder %s28, 1
      %p93 = scmp.ne.s32.totalorder %s88, %s90
      %p94 = scmp.eq.s32.totalorder %s28, 0
      %p95 = por %p93, %p94
      %p96 = scmp.ne.s32.totalorder %s88, %s90
      %p97 = scmp.eq.s32.totalorder %s33, 1
      %p98 = por %p96, %p97
      %p99 = scmp.ne.s32.totalorder %s90, %s91
      %p100 = scmp.eq.s32.totalorder %s33, 0
      %p101 = por %p99, %p100
      %p102 = scmp.ne.s32.totalorder %s90, %s91
      %p103 = scmp.eq.s32.totalorder %s34, 1
      %p104 = por %p102, %p103
      %p106 = scmp.ne.s32.totalorder %s91, %s105
      %p107 = scmp.eq.s32.totalorder %s34, 0
      %p108 = por %p106, %p107
      %s110 = sadd.s32 %s109, 1
      %p113 = scmp.eq.s32.totalorder %s28, 1
      %p114 = scmp.ne.s32.totalorder %s109, %s111
      %p115 = scmp.eq.s32.totalorder %s28, 0
      %p116 = por %p114, %p115
      %p117 = scmp.ne.s32.totalorder %s109, %s111
      %p118 = scmp.eq.s32.totalorder %s33, 1
      %p119 = por %p117, %p118
      %p120 = scmp.ne.s32.totalorder %s111, %s112
      %p121 = scmp.eq.s32.totalorder %s33, 0
      %p122 = por %p120, %p121
      %p123 = scmp.ne.s32.totalorder %s111, %s112
      %p124 = scmp.eq.s32.totalorder %s34, 1
      %p125 = por %p123, %p124
      %p127 = scmp.ne.s32.totalorder %s112, %s126
      %p128 = scmp.eq.s32.totalorder %s34, 0
      %p129 = por %p127, %p128
      %s131 = sadd.s32 %s130, 1
      %p134 = scmp.eq.s32.totalorder %s28, 1
      %p135 = scmp.ne.s32.totalorder %s130, %s132
      %p136 = scmp.eq.s32.totalorder %s28, 0
      %p137 = por %p135, %p136
      %p138 = scmp.ne.s32.totalorder %s130, %s132
      %p139 = scmp.eq.s32.totalorder %s33, 1
      %p140 = por %p138, %p139
      %p141 = scmp.ne.s32.totalorder %s132, %s133
      %p142 = scmp.eq.s32.totalorder %s33, 0
      %p143 = por %p141, %p142
      %p144 = scmp.ne.s32.totalorder %s132, %s133
      %p145 = scmp.eq.s32.totalorder %s34, 1
      %p146 = por %p144, %p145
      %p148 = scmp.ne.s32.totalorder %s133, %s147
      %p149 = scmp.eq.s32.totalorder %s34, 0
      %p150 = por %p148, %p149
      %s152 = sadd.s32 %s151, 1
      %p155 = scmp.eq.s32.totalorder %s28, 1
      %p156 = scmp.ne.s32.totalorder %s151, %s153
      %p157 = scmp.eq.s32.totalorder %s28, 0
      %p158 = por %p156, %p157
      %p159 = scmp.ne.s32.totalorder %s151, %s153
      %p160 = scmp.eq.s32.totalorder %s33, 1
      %p161 = por %p159, %p160
      %p162 = scmp.ne.s32.totalorder %s153, %s154
      %p163 = scmp.eq.s32.totalorder %s33, 0
      %p164 = por %p162, %p163
      %p165 = scmp.ne.s32.totalorder %s153, %s154
      %p166 = scmp.eq.s32.totalorder %s34, 1
      %p167 = por %p165, %p166
      %p169 = scmp.ne.s32.totalorder %s154, %s168
      %p170 = scmp.eq.s32.totalorder %s34, 0
      %p171 = por %p169, %p170
      %s173 = sadd.s32 %s172, 1
      %p176 = scmp.eq.s32.totalorder %s28, 1
      %p177 = scmp.ne.s32.totalorder %s172, %s174
      %p178 = scmp.eq.s32.totalorder %s28, 0
      %p179 = por %p177, %p178
      %p180 = scmp.ne.s32.totalorder %s172, %s174
      %p181 = scmp.eq.s32.totalorder %s33, 1
      %p182 = por %p180, %p181
      %p183 = scmp.ne.s32.totalorder %s174, %s175
      %p184 = scmp.eq.s32.totalorder %s33, 0
      %p185 = por %p183, %p184
      %p186 = scmp.ne.s32.totalorder %s174, %s175
      %p187 = scmp.eq.s32.totalorder %s34, 1
      %p188 = por %p186, %p187
      %p190 = scmp.ne.s32.totalorder %s175, %s189
      %p191 = scmp.eq.s32.totalorder %s34, 0
      %p192 = por %p190, %p191
      %s193 = ssub.s32 %s28, %s35
      %p194 = scmp.eq.s32.totalorder %s193, 0
      %s196 = sadd.s32 %s195, 1
      %s197 = scalar_select %p194, %s195, %s196
      %p200 = pneg %p194
      %p201 = scmp.eq.s32.totalorder %s28, 1
      %p202 = por %p200, %p201
      %p203 = scmp.ne.s32.totalorder %s195, %s198
      %p204 = scmp.eq.s32.totalorder %s28, 0
      %p205 = por %p203, %p204
      %p206 = scmp.ne.s32.totalorder %s195, %s198
      %p207 = scmp.eq.s32.totalorder %s33, 1
      %p208 = por %p206, %p207
      %p209 = scmp.ne.s32.totalorder %s198, %s199
      %p210 = scmp.eq.s32.totalorder %s33, 0
      %p211 = por %p209, %p210
      %p212 = scmp.ne.s32.totalorder %s198, %s199
      %p213 = scmp.eq.s32.totalorder %s34, 1
      %p214 = por %p212, %p213
      %p216 = scmp.ne.s32.totalorder %s199, %s215
      %p217 = scmp.eq.s32.totalorder %s34, 0
      %p218 = por %p216, %p217
      %s219 = ssub.s32 %s28, %s35
      %p220 = scmp.eq.s32.totalorder %s219, 0
      %s222 = sadd.s32 %s221, 1
      %s223 = scalar_select %p220, %s221, %s222
      %p226 = pneg %p220
      %p227 = scmp.eq.s32.totalorder %s28, 1
      %p228 = por %p226, %p227
      %p229 = scmp.ne.s32.totalorder %s221, %s224
      %p230 = scmp.eq.s32.totalorder %s28, 0
      %p231 = por %p229, %p230
      %p232 = scmp.ne.s32.totalorder %s221, %s224
      %p233 = scmp.eq.s32.totalorder %s33, 1
      %p234 = por %p232, %p233
      %p235 = scmp.ne.s32.totalorder %s224, %s225
      %p236 = scmp.eq.s32.totalorder %s33, 0
      %p237 = por %p235, %p236
      %p238 = scmp.ne.s32.totalorder %s224, %s225
      %p239 = scmp.eq.s32.totalorder %s34, 1
      %p240 = por %p238, %p239
      %p242 = scmp.ne.s32.totalorder %s225, %s241
      %p243 = scmp.eq.s32.totalorder %s34, 0
      %p244 = por %p242, %p243
      %p245 = scmp.le.s32.totalorder 1, %s28
      %p246 = scmp.lt.s32.totalorder %s28, 3
      %p247 = pnand %p245, %p246
      %p248 = pneg %p247
      // Predicated region
      $region9: #{tpu_custom_call.1} parent=5 // pred_check
        _
      $region10: #{tpu_custom_call.1} parent=5 // pred_check_branch
        %250 = sbr.rel (%p247) target = $region12
      $region11: #{tpu_custom_call.1} parent=5 // pred_region
        %s251 = ssub.s32 %s28, 1
        // Predicated region
        $region13: #{tpu_custom_call.1} parent=11 // pred_check
          %p252 = pneg %p101
        $region14: #{tpu_custom_call.1} parent=11 // pred_check_branch
          %254 = sbr.rel (%p252) target = $region16
        $region15: #{tpu_custom_call.1} parent=11 // pred_region
          %s256 = ssub.s32 512, 512
          %257 = vsyncadd [#allocation8], %s256
          %s258 = sshll.u32 [#allocation9], 4
          %s259 = int_to_ptr.vmem [resolvable:$true] %s258
          %264 = dma.hbm_to_vmem [thread:$0]  %s2, 512, %s259, [#allocation8], 128, 128, 8
        $region16: #{tpu_custom_call.1} parent=11 // pred_fallthru
          _
        // Predicated region
        $region17: #{tpu_custom_call.1} parent=11 // pred_check
          %p265 = pneg %p122
        $region18: #{tpu_custom_call.1} parent=11 // pred_check_branch
          %267 = sbr.rel (%p265) target = $region20
        $region19: #{tpu_custom_call.1} parent=11 // pred_region
          %s269 = ssub.s32 512, 512
          %270 = vsyncadd [#allocation11], %s269
          %s271 = sshll.u32 [#allocation10], 4
          %s272 = int_to_ptr.vmem [resolvable:$true] %s271
          %277 = dma.hbm_to_vmem [thread:$0]  %s3, 512, %s272, [#allocation11], 128, 128, 8
        $region20: #{tpu_custom_call.1} parent=11 // pred_fallthru
          _
        // Predicated region
        $region21: #{tpu_custom_call.1} parent=11 // pred_check
          %p278 = pneg %p143
        $region22: #{tpu_custom_call.1} parent=11 // pred_check_branch
          %280 = sbr.rel (%p278) target = $region24
        $region23: #{tpu_custom_call.1} parent=11 // pred_region
          _
        $region24: #{tpu_custom_call.1} parent=11 // pred_fallthru
          _
        // Predicated region
        $region25: #{tpu_custom_call.1} parent=11 // pred_check
          %p281 = pneg %p164
        $region26: #{tpu_custom_call.1} parent=11 // pred_check_branch
          %283 = sbr.rel (%p281) target = $region28
        $region27: #{tpu_custom_call.1} parent=11 // pred_region
          _
        $region28: #{tpu_custom_call.1} parent=11 // pred_fallthru
          _
        // Predicated region
        $region29: #{tpu_custom_call.1} parent=11 // pred_check
          %p284 = pneg %p185
        $region30: #{tpu_custom_call.1} parent=11 // pred_check_branch
          %286 = sbr.rel (%p284) target = $region32
        $region31: #{tpu_custom_call.1} parent=11 // pred_region
          _
        $region32: #{tpu_custom_call.1} parent=11 // pred_fallthru
          _
      $region12: #{tpu_custom_call.1} parent=5 // pred_fallthru
        _
      %p287 = scmp.lt.s32.totalorder %s28, 2
      // Predicated region
      $region33: #{tpu_custom_call.1} parent=5 // pred_check
        %p288 = pneg %p287
      $region34: #{tpu_custom_call.1} parent=5 // pred_check_branch
        %290 = sbr.rel (%p288) target = $region36
      $region35: #{tpu_custom_call.1} parent=5 // pred_region
        // Predicated region
        $region37: #{tpu_custom_call.1} parent=35 // pred_check
          %p291 = pneg %p48
        $region38: #{tpu_custom_call.1} parent=35 // pred_check_branch
          %293 = sbr.rel (%p291) target = $region40
        $region39: #{tpu_custom_call.1} parent=35 // pred_region
          %s294 = sand.u32 %s38, 1
          %s295 = scalar_lea.sflag [#allocation5], %s294
          %s296 = sand.u32 %s38, 1
          %s297 = smul.addr %s296, 8
          %s298 = scalar_lea.vmem [#allocation4], %s297
          %s300 = ssub.s32 128, 128
          %301 = vsyncadd %s295, %s300
          %s302 = smul.addr %s28, 128
          %s303 = scalar_lea.hbm %s0, %s302
          %s305 = sshll.u32 %s298, 4
          %s306 = int_to_ptr.vmem [resolvable:$true] %s305
          %308 = dma.hbm_to_vmem [thread:$0]  %s303, 128, %s306, %s295
        $region40: #{tpu_custom_call.1} parent=35 // pred_fallthru
          _
        // Predicated region
        $region41: #{tpu_custom_call.1} parent=35 // pred_check
          %p309 = pneg %p74
        $region42: #{tpu_custom_call.1} parent=35 // pred_check_branch
          %311 = sbr.rel (%p309) target = $region44
        $region43: #{tpu_custom_call.1} parent=35 // pred_region
          %s312 = sand.u32 %s28, 1
          %s313 = scalar_lea.sflag [#allocation8], %s312
          %s314 = sand.u32 %s64, 1
          %s315 = smul.addr %s314, 16
          %s316 = scalar_lea.vmem [#allocation7], %s315
          %s318 = ssub.s32 256, 256
          %319 = vsyncadd %s313, %s318
          %s320 = smul.addr %s28, 2
          %s321 = smul.addr %s320, 128
          %s322 = scalar_lea.hbm %s1, %s321
          %s323 = sshll.u32 %s316, 4
          %s324 = int_to_ptr.vmem [resolvable:$true] %s323
          %329 = dma.hbm_to_vmem [thread:$0]  %s322, 256, %s324, %s313, 128, 128, 8
        $region44: #{tpu_custom_call.1} parent=35 // pred_fallthru
          _
      $region36: #{tpu_custom_call.1} parent=5 // pred_fallthru
        _
      %p330 = scmp.le.s32.totalorder 1, %s28
      %p331 = scmp.lt.s32.totalorder %s28, 3
      %p332 = pnand %p330, %p331
      %p333 = pneg %p332
      // Predicated region
      $region45: #{tpu_custom_call.1} parent=5 // pred_check
        _
      $region46: #{tpu_custom_call.1} parent=5 // pred_check_branch
        %335 = sbr.rel (%p332) target = $region48
      $region47: #{tpu_custom_call.1} parent=5 // pred_region
        %s336 = ssub.s32 %s28, 1
        %s337 = sand.u32 %s41, 1
        %s338 = scalar_lea.sflag [#allocation5], %s337
        %s339 = sand.u32 %s41, 1
        %s340 = smul.addr %s339, 8
        %s341 = scalar_lea.vmem [#allocation4], %s340
        // Predicated region
        $region49: #{tpu_custom_call.1} parent=47 // pred_check
          %p342 = pneg %p54
        $region50: #{tpu_custom_call.1} parent=47 // pred_check_branch
          %344 = sbr.rel (%p342) target = $region52
        $region51: #{tpu_custom_call.1} parent=47 // pred_region
          %345 = dma.done %s338, 128
        $region52: #{tpu_custom_call.1} parent=47 // pred_fallthru
          _
        %s346 = sand.u32 %s33, 1
        %s347 = scalar_lea.sflag [#allocation8], %s346
        %s348 = sand.u32 %s67, 1
        %s349 = smul.addr %s348, 16
        %s350 = scalar_lea.vmem [#allocation7], %s349
        // Predicated region
        $region53: #{tpu_custom_call.1} parent=47 // pred_check
          %p351 = pneg %p80
        $region54: #{tpu_custom_call.1} parent=47 // pred_check_branch
          %353 = sbr.rel (%p351) target = $region56
        $region55: #{tpu_custom_call.1} parent=47 // pred_region
          %354 = dma.done %s347, 256
        $region56: #{tpu_custom_call.1} parent=47 // pred_fallthru
          _
        // Predicated region
        $region57: #{tpu_custom_call.1} parent=47 // pred_check
          %p355 = pneg %p101
        $region58: #{tpu_custom_call.1} parent=47 // pred_check_branch
          %357 = sbr.rel (%p355) target = $region60
        $region59: #{tpu_custom_call.1} parent=47 // pred_region
          %358 = dma.done [#allocation8], 512
        $region60: #{tpu_custom_call.1} parent=47 // pred_fallthru
          _
        // Predicated region
        $region61: #{tpu_custom_call.1} parent=47 // pred_check
          %p359 = pneg %p122
        $region62: #{tpu_custom_call.1} parent=47 // pred_check_branch
          %361 = sbr.rel (%p359) target = $region64
        $region63: #{tpu_custom_call.1} parent=47 // pred_region
          %362 = dma.done [#allocation11], 512
        $region64: #{tpu_custom_call.1} parent=47 // pred_fallthru
          _
        %s363 = sand.u32 %s41, 1
        %s364 = scalar_lea.sflag [#allocation5], %s363
        %s365 = sand.u32 %s41, 1
        %s366 = smul.addr %s365, 8
        %s367 = scalar_lea.vmem [#allocation4], %s366
        %p368 = pneg %p54
        %p369 = pneg %p51
        %s370 = sand.u32 %s33, 1
        %s371 = scalar_lea.sflag [#allocation8], %s370
        %s372 = sand.u32 %s67, 1
        %s373 = smul.addr %s372, 16
        %s374 = scalar_lea.vmem [#allocation7], %s373
        %p375 = pneg %p80
        %p376 = pneg %p77
        %p377 = pneg %p101
        %p378 = pneg %p98
        %p379 = pneg %p122
        %p380 = pneg %p119
        %p381 = pneg %p143
        %p382 = pneg %p140
        %p383 = pneg %p164
        %p384 = pneg %p161
        %p385 = pneg %p185
        %p386 = pneg %p182
        %p387 = pneg %p211
        %p388 = pneg %p208
        %s389 = sand.u32 %s198, 1
        %s390 = scalar_lea.sflag [#allocation6], %s389
        %s391 = sand.u32 %s198, 1
        %s392 = smul.addr %s391, 8
        %s393 = scalar_lea.vmem [#allocation12], %s392
        %p394 = pneg %p237
        %p395 = pneg %p234
        %s396 = sand.u32 %s224, 1
        %s397 = scalar_lea.sflag [#allocation14], %s396
        %s398 = sand.u32 %s224, 1
        %s399 = smul.addr %s398, 8
        %s400 = scalar_lea.vmem [#allocation13], %s399
        %v401 = vld [vmem:[%s341] sm:$0xff]
        %v402 = vld [vmem:[#allocation9] sm:$0xff]
        %v403 = vld [vmem:[#allocation9 + $0x8] sm:$0xff]
        %v404 = vld [vmem:[#allocation9 + $0x10] sm:$0xff]
        %v405 = vld [vmem:[#allocation9 + $0x18] sm:$0xff]
        %v406 = vld [vmem:[%s4] sm:$0x1]
        %v408 = vlaneseq
        %v409 = vshrl.u32 %v408, 7
        %v410 = vsub.s32 0, %v409
        %v411 = vrot.slane %v406, %v410
        %vm413 = vcmask 261120
        %v415 = vsel %vm413, %v401, 0
        %417 = vmatprep.subr.mxu0 0.0
        %418 = vmatpush1.msra.mxu0 0.0
        %419 = vmatprep.subr.mxu0 0.0
        %420 = vmatpush1.msra.mxu0 0.0
        %421 = vmatprep.subr.mxu0 0.0
        %422 = vmatpush1.msra.mxu0 0.0
        %423 = vmatprep.subr.mxu0 0.0
        %424 = vmatpush1.msra.mxu0 0.0
        %425 = vmatprep.subr.mxu0 0.0
        %426 = vmatpush1.msra.mxu0 0.0
        %427 = vmatprep.subr.mxu0 0.0
        %428 = vmatpush1.msra.mxu0 0.0
        %429 = vmatprep.subr.mxu0 0.0
        %430 = vmatpush1.msra.mxu0 0.0
        %431 = vmatprep.subr.mxu0 0.0
        %432 = vmatpush1.msra.mxu0 0.0
        %433 = vmatprep.subr.mxu0 0.0
        %434 = vmatpush1.msra.mxu0 0.0
        %435 = vmatprep.subr.mxu0 0.0
        %436 = vmatpush1.msra.mxu0 0.0
        %437 = vmatprep.subr.mxu0 0.0
        %438 = vmatpush1.msra.mxu0 0.0
        %439 = vmatprep.subr.mxu0 0.0
        %440 = vmatpush1.msra.mxu0 0.0
        %441 = vmatprep.subr.mxu0 0.0
        %442 = vmatpush1.msra.mxu0 %v405
        %443 = vmatprep.subr.mxu0 0.0
        %444 = vmatpush1.msra.mxu0 %v404
        %445 = vmatprep.subr.mxu0 0.0
        %446 = vmatpush1.msra.mxu0 %v403
        %447 = vmatprep.subr.mxu0 0.0
        %448 = vmatpush1.msra.mxu0 %v402
        %449 = vmatprep.subr.mxu0 0.0
        %450 = vmatpush2.msra.mxu0 0.0
        %451 = vmatprep.subr.mxu0 0.0
        %452 = vmatpush2.msra.mxu0 0.0
        %453 = vmatprep.subr.mxu0 0.0
        %454 = vmatpush2.msra.mxu0 0.0
        %455 = vmatprep.subr.mxu0 0.0
        %456 = vmatpush2.msra.mxu0 0.0
        %457 = vmatprep.subr.mxu0 0.0
        %458 = vmatpush2.msra.mxu0 0.0
        %459 = vmatprep.subr.mxu0 0.0
        %460 = vmatpush2.msra.mxu0 0.0
        %461 = vmatprep.subr.mxu0 0.0
        %462 = vmatpush2.msra.mxu0 0.0
        %463 = vmatprep.subr.mxu0 0.0
        %464 = vmatpush2.msra.mxu0 0.0
        %465 = vmatprep.subr.mxu0 0.0
        %466 = vmatpush2.msra.mxu0 0.0
        %467 = vmatprep.subr.mxu0 0.0
        %468 = vmatpush2.msra.mxu0 0.0
        %469 = vmatprep.subr.mxu0 0.0
        %470 = vmatpush2.msra.mxu0 0.0
        %471 = vmatprep.subr.mxu0 0.0
        %472 = vmatpush2.msra.mxu0 0.0
        %473 = vmatprep.subr.mxu0 0.0
        %474 = vmatpush2.msra.mxu0 0.0
        %475 = vmatprep.subr.mxu0 0.0
        %476 = vmatpush2.msra.mxu0 0.0
        %477 = vmatprep.subr.mxu0 0.0
        %478 = vmatpush2.msra.mxu0 0.0
        %479 = vmatprep.subr.mxu0 0.0
        %480 = vmatpush2.msra.mxu0 0.0
        %481 = vmatprep.mubr.f32.mxu0 0.0
        %482 = vmatmul.mubr.f32.gmra.mxu0 %v415
        %v483 = vpop.f32.mrf.mxu0
        %v484 = vadd.f32 %v411, %v483
        %v485 = vpop.f32.mrf.mxu0
        %486 = vdwg.mxu0
        %487 = vst.msk [vmem:[#allocation2] sm:$0xff] %vm413, %v484
        %v488 = vld [vmem:[%s350] sm:$0xff]
        %v489 = vld [vmem:[%s350 + $0x8] sm:$0xff]
        %v490 = vld [vmem:[#allocation10] sm:$0xff]
        %v491 = vld [vmem:[#allocation10 + $0x8] sm:$0xff]
        %v492 = vld [vmem:[#allocation10 + $0x10] sm:$0xff]
        %v493 = vld [vmem:[#allocation10 + $0x18] sm:$0xff]
        %v495 = vsel %vm413, %v488, 0
        %v498 = vsel %vm413, %v489, 0
        %500 = vmatprep.subr.mxu0 0.0
        %501 = vmatpush1.msra.mxu0 0.0
        %502 = vmatprep.subr.mxu0 0.0
        %503 = vmatpush1.msra.mxu0 0.0
        %504 = vmatprep.subr.mxu0 0.0
        %505 = vmatpush1.msra.mxu0 0.0
        %506 = vmatprep.subr.mxu0 0.0
        %507 = vmatpush1.msra.mxu0 0.0
        %508 = vmatprep.subr.mxu0 0.0
        %509 = vmatpush1.msra.mxu0 0.0
        %510 = vmatprep.subr.mxu0 0.0
        %511 = vmatpush1.msra.mxu0 0.0
        %512 = vmatprep.subr.mxu0 0.0
        %513 = vmatpush1.msra.mxu0 0.0
        %514 = vmatprep.subr.mxu0 0.0
        %515 = vmatpush1.msra.mxu0 0.0
        %516 = vmatprep.subr.mxu0 0.0
        %517 = vmatpush1.msra.mxu0 0.0
        %518 = vmatprep.subr.mxu0 0.0
        %519 = vmatpush1.msra.mxu0 0.0
        %520 = vmatprep.subr.mxu0 0.0
        %521 = vmatpush1.msra.mxu0 0.0
        %522 = vmatprep.subr.mxu0 0.0
        %523 = vmatpush1.msra.mxu0 0.0
        %524 = vmatprep.subr.mxu0 0.0
        %525 = vmatpush1.msra.mxu0 %v493
        %526 = vmatprep.subr.mxu0 0.0
        %527 = vmatpush1.msra.mxu0 %v492
        %528 = vmatprep.subr.mxu0 0.0
        %529 = vmatpush1.msra.mxu0 %v491
        %530 = vmatprep.subr.mxu0 0.0
        %531 = vmatpush1.msra.mxu0 %v490
        %532 = vmatprep.subr.mxu0 0.0
        %533 = vmatpush2.msra.mxu0 0.0
        %534 = vmatprep.subr.mxu0 0.0
        %535 = vmatpush2.msra.mxu0 0.0
        %536 = vmatprep.subr.mxu0 0.0
        %537 = vmatpush2.msra.mxu0 0.0
        %538 = vmatprep.subr.mxu0 0.0
        %539 = vmatpush2.msra.mxu0 0.0
        %540 = vmatprep.subr.mxu0 0.0
        %541 = vmatpush2.msra.mxu0 0.0
        %542 = vmatprep.subr.mxu0 0.0
        %543 = vmatpush2.msra.mxu0 0.0
        %544 = vmatprep.subr.mxu0 0.0
        %545 = vmatpush2.msra.mxu0 0.0
        %546 = vmatprep.subr.mxu0 0.0
        %547 = vmatpush2.msra.mxu0 0.0
        %548 = vmatprep.subr.mxu0 0.0
        %549 = vmatpush2.msra.mxu0 0.0
        %550 = vmatprep.subr.mxu0 0.0
        %551 = vmatpush2.msra.mxu0 0.0
        %552 = vmatprep.subr.mxu0 0.0
        %553 = vmatpush2.msra.mxu0 0.0
        %554 = vmatprep.subr.mxu0 0.0
        %555 = vmatpush2.msra.mxu0 0.0
        %556 = vmatprep.subr.mxu0 0.0
        %557 = vmatpush2.msra.mxu0 0.0
        %558 = vmatprep.subr.mxu0 0.0
        %559 = vmatpush2.msra.mxu0 0.0
        %560 = vmatprep.subr.mxu0 0.0
        %561 = vmatpush2.msra.mxu0 0.0
        %562 = vmatprep.subr.mxu0 0.0
        %563 = vmatpush2.msra.mxu0 0.0
        %564 = vmatprep.mubr.f32.mxu0 0.0
        %565 = vmatmul.mubr.f32.gmra.mxu0 %v495
        %v566 = vpop.f32.mrf.mxu0
        %v567 = vadd.f32 0.0, %v566
        %v568 = vpop.f32.mrf.mxu0
        %569 = vmatprep.mubr.f32.mxu0 0.0
        %570 = vmatmul.mubr.f32.gmra.mxu0 %v498
        %v571 = vpop.f32.mrf.mxu0
        %v572 = vadd.f32 0.0, %v571
        %v573 = vpop.f32.mrf.mxu0
        %574 = vdwg.mxu0
        %575 = vst.msk [vmem:[#allocation3] sm:$0xff] %vm413, %v567
        %576 = vst.msk [vmem:[#allocation3 + $0x8] sm:$0xff] %vm413, %v572
        %v577 = vld [vmem:[%s5] sm:$0x1]
        %v578 = vld [vmem:[%s6] sm:$0x1]
        %v579 = vld [vmem:[#allocation2] sm:$0xff]
        %v580 = vld [vmem:[#allocation3] sm:$0xff]
        %v581 = vld [vmem:[#allocation3 + $0x8] sm:$0xff]
        %v582 = vld [vmem:[%s350] sm:$0xff]
        %v583 = vld [vmem:[%s350 + $0x8] sm:$0xff]
        %v585 = vcombine.high %v579, %v579
        %v587 = vunpack.c.l.s4 1966171168
        %v588 = vunpack.c.0.s8 %v587
        %v589 = vlaneseq
        %v590 = vshrl.u32 %v589, 7
        %v591 = vsub.s32 %v588, %v590
        %v592 = vrot.slane %v579, %v591
        %v594 = vunpack.c.l.s4 1966171168
        %v595 = vunpack.c.0.s8 %v594
        %v596 = vlaneseq
        %v597 = vshrl.u32 %v596, 7
        %v598 = vsub.s32 %v595, %v597
        %v599 = vrot.slane %v585, %v598
        %v600 = vcombine.high %v592, %v592
        %v601 = vcombine.high %v599, %v599
        %v603 = vunpack.c.l.s4 1966171168
        %v604 = vunpack.c.0.s8 %v603
        %v605 = vlaneseq
        %v606 = vshrl.u32 %v605, 7
        %v607 = vsub.s32 %v604, %v606
        %v608 = vrot.slane %v592, %v607
        %v610 = vunpack.c.l.s4 1966171168
        %v611 = vunpack.c.0.s8 %v610
        %v612 = vlaneseq
        %v613 = vshrl.u32 %v612, 7
        %v614 = vsub.s32 %v611, %v613
        %v615 = vrot.slane %v599, %v614
        %v617 = vunpack.c.l.s4 1966171168
        %v618 = vunpack.c.0.s8 %v617
        %v619 = vlaneseq
        %v620 = vshrl.u32 %v619, 7
        %v621 = vsub.s32 %v618, %v620
        %v622 = vrot.slane %v600, %v621
        %v624 = vunpack.c.l.s4 1966171168
        %v625 = vunpack.c.0.s8 %v624
        %v626 = vlaneseq
        %v627 = vshrl.u32 %v626, 7
        %v628 = vsub.s32 %v625, %v627
        %v629 = vrot.slane %v601, %v628
        %v630 = vcombine.high %v608, %v608
        %v631 = vcombine.high %v615, %v615
        %v632 = vcombine.high %v622, %v622
        %v633 = vcombine.high %v629, %v629
        %v634 = vlaneseq
        %v635 = vshrl.u32 %v634, 7
        %v636 = vsub.s32 0, %v635
        %v637 = vrot.slane %v608, %v636
        %v638 = vlaneseq
        %v639 = vshrl.u32 %v638, 7
        %v640 = vsub.s32 0, %v639
        %v641 = vrot.slane %v622, %v640
        %v642 = vlaneseq
        %v643 = vshrl.u32 %v642, 7
        %v644 = vsub.s32 0, %v643
        %v645 = vrot.slane %v630, %v644
        %v646 = vlaneseq
        %v647 = vshrl.u32 %v646, 7
        %v648 = vsub.s32 0, %v647
        %v649 = vrot.slane %v632, %v648
        %v650 = vlaneseq
        %v651 = vshrl.u32 %v650, 7
        %v652 = vsub.s32 0, %v651
        %v653 = vrot.slane %v615, %v652
        %v654 = vlaneseq
        %v655 = vshrl.u32 %v654, 7
        %v656 = vsub.s32 0, %v655
        %v657 = vrot.slane %v629, %v656
        %v658 = vlaneseq
        %v659 = vshrl.u32 %v658, 7
        %v660 = vsub.s32 0, %v659
        %v661 = vrot.slane %v631, %v660
        %v662 = vlaneseq
        %v663 = vshrl.u32 %v662, 7
        %v664 = vsub.s32 0, %v663
        %v665 = vrot.slane %v633, %v664
        %v674 = vadd.f32 %v637, %v580
        %v675 = vadd.f32 %v637, %v581
        %v676 = vadd.f32 %v641, %v580
        %v677 = vadd.f32 %v641, %v581
        %v678 = vadd.f32 %v645, %v580
        %v679 = vadd.f32 %v645, %v581
        %v680 = vadd.f32 %v649, %v580
        %v681 = vadd.f32 %v649, %v581
        %v682 = vadd.f32 %v653, %v580
        %v683 = vadd.f32 %v653, %v581
        %v684 = vadd.f32 %v657, %v580
        %v685 = vadd.f32 %v657, %v581
        %v686 = vadd.f32 %v661, %v580
        %v687 = vadd.f32 %v661, %v581
        %v688 = vadd.f32 %v665, %v580
        %v689 = vadd.f32 %v665, %v581
        %v690 = vmax.f32 %v674, 0.0
        %v691 = vmax.f32 %v675, 0.0
        %v692 = vmax.f32 %v676, 0.0
        %v693 = vmax.f32 %v677, 0.0
        %v694 = vmax.f32 %v678, 0.0
        %v695 = vmax.f32 %v679, 0.0
        %v696 = vmax.f32 %v680, 0.0
        %v697 = vmax.f32 %v681, 0.0
        %v698 = vmax.f32 %v682, 0.0
        %v699 = vmax.f32 %v683, 0.0
        %v700 = vmax.f32 %v684, 0.0
        %v701 = vmax.f32 %v685, 0.0
        %v702 = vmax.f32 %v686, 0.0
        %v703 = vmax.f32 %v687, 0.0
        %v704 = vmax.f32 %v688, 0.0
        %v705 = vmax.f32 %v689, 0.0
        %v707 = vlaneseq
        %v708 = vshrl.u32 %v707, 7
        %v709 = vsub.s32 0, %v708
        %v710 = vrot.slane %v578, %v709
        %v712 = vmul.f32 %v690, %v710
        %v713 = vmul.f32 %v691, %v710
        %v714 = vmul.f32 %v692, %v710
        %v715 = vmul.f32 %v693, %v710
        %v716 = vmul.f32 %v694, %v710
        %v717 = vmul.f32 %v695, %v710
        %v718 = vmul.f32 %v696, %v710
        %v719 = vmul.f32 %v697, %v710
        %v720 = vmul.f32 %v698, %v710
        %v721 = vmul.f32 %v699, %v710
        %v722 = vmul.f32 %v700, %v710
        %v723 = vmul.f32 %v701, %v710
        %v724 = vmul.f32 %v702, %v710
        %v725 = vmul.f32 %v703, %v710
        %v726 = vmul.f32 %v704, %v710
        %v727 = vmul.f32 %v705, %v710
        %v728 = vsel %vm413, %v712, 0.0
        %729 = vadd.xlane.f32.xlu0 %v728
        %v730 = vpop.xlane.xlu0 %729
        %v731 = vsel %vm413, %v713, 0.0
        %732 = vadd.xlane.f32.xlu0 %v731
        %v733 = vpop.xlane.xlu0 %732
        %v734 = vsel %vm413, %v714, 0.0
        %735 = vadd.xlane.f32.xlu0 %v734
        %v736 = vpop.xlane.xlu0 %735
        %v737 = vsel %vm413, %v715, 0.0
        %738 = vadd.xlane.f32.xlu0 %v737
        %v739 = vpop.xlane.xlu0 %738
        %v740 = vsel %vm413, %v716, 0.0
        %741 = vadd.xlane.f32.xlu0 %v740
        %v742 = vpop.xlane.xlu0 %741
        %v743 = vsel %vm413, %v717, 0.0
        %744 = vadd.xlane.f32.xlu0 %v743
        %v745 = vpop.xlane.xlu0 %744
        %v746 = vsel %vm413, %v718, 0.0
        %747 = vadd.xlane.f32.xlu0 %v746
        %v748 = vpop.xlane.xlu0 %747
        %v749 = vsel %vm413, %v719, 0.0
        %750 = vadd.xlane.f32.xlu0 %v749
        %v751 = vpop.xlane.xlu0 %750
        %v752 = vsel %vm413, %v720, 0.0
        %753 = vadd.xlane.f32.xlu0 %v752
        %v754 = vpop.xlane.xlu0 %753
        %v755 = vsel %vm413, %v721, 0.0
        %756 = vadd.xlane.f32.xlu0 %v755
        %v757 = vpop.xlane.xlu0 %756
        %v758 = vsel %vm413, %v722, 0.0
        %759 = vadd.xlane.f32.xlu0 %v758
        %v760 = vpop.xlane.xlu0 %759
        %v761 = vsel %vm413, %v723, 0.0
        %762 = vadd.xlane.f32.xlu0 %v761
        %v763 = vpop.xlane.xlu0 %762
        %v764 = vsel %vm413, %v724, 0.0
        %765 = vadd.xlane.f32.xlu0 %v764
        %v766 = vpop.xlane.xlu0 %765
        %v767 = vsel %vm413, %v725, 0.0
        %768 = vadd.xlane.f32.xlu0 %v767
        %v769 = vpop.xlane.xlu0 %768
        %v770 = vsel %vm413, %v726, 0.0
        %771 = vadd.xlane.f32.xlu0 %v770
        %v772 = vpop.xlane.xlu0 %771
        %v773 = vsel %vm413, %v727, 0.0
        %774 = vadd.xlane.f32.xlu0 %v773
        %v775 = vpop.xlane.xlu0 %774
        %v777 = vsel %vm413, %v577, 0
        %v780 = vsel %vm413, %v580, 0
        %v783 = vsel %vm413, %v581, 0
        %785 = vmatprep.subr.mxu0 0.0
        %786 = vmatpush1.xpose.msra.mxu0 0.0
        %787 = vmatprep.subr.mxu0 0.0
        %788 = vmatpush1.xpose.msra.mxu0 0.0
        %789 = vmatprep.subr.mxu0 0.0
        %790 = vmatpush1.xpose.msra.mxu0 0.0
        %791 = vmatprep.subr.mxu0 0.0
        %792 = vmatpush1.xpose.msra.mxu0 0.0
        %793 = vmatprep.subr.mxu0 0.0
        %794 = vmatpush1.xpose.msra.mxu0 0.0
        %795 = vmatprep.subr.mxu0 0.0
        %796 = vmatpush1.xpose.msra.mxu0 0.0
        %797 = vmatprep.subr.mxu0 0.0
        %798 = vmatpush1.xpose.msra.mxu0 0.0
        %799 = vmatprep.subr.mxu0 0.0
        %800 = vmatpush1.xpose.msra.mxu0 0.0
        %801 = vmatprep.subr.mxu0 0.0
        %802 = vmatpush1.xpose.msra.mxu0 0.0
        %803 = vmatprep.subr.mxu0 0.0
        %804 = vmatpush1.xpose.msra.mxu0 0.0
        %805 = vmatprep.subr.mxu0 0.0
        %806 = vmatpush1.xpose.msra.mxu0 0.0
        %807 = vmatprep.subr.mxu0 0.0
        %808 = vmatpush1.xpose.msra.mxu0 0.0
        %809 = vmatprep.subr.mxu0 0.0
        %810 = vmatpush1.xpose.msra.mxu0 0.0
        %811 = vmatprep.subr.mxu0 0.0
        %812 = vmatpush1.xpose.msra.mxu0 0.0
        %813 = vmatprep.subr.mxu0 0.0
        %814 = vmatpush1.xpose.msra.mxu0 %v783
        %815 = vmatprep.subr.mxu0 0.0
        %816 = vmatpush1.xpose.msra.mxu0 %v780
        %817 = vmatprep.subr.mxu0 0.0
        %818 = vmatpush2.xpose.msra.mxu0 0.0
        %819 = vmatprep.subr.mxu0 0.0
        %820 = vmatpush2.xpose.msra.mxu0 0.0
        %821 = vmatprep.subr.mxu0 0.0
        %822 = vmatpush2.xpose.msra.mxu0 0.0
        %823 = vmatprep.subr.mxu0 0.0
        %824 = vmatpush2.xpose.msra.mxu0 0.0
        %825 = vmatprep.subr.mxu0 0.0
        %826 = vmatpush2.xpose.msra.mxu0 0.0
        %827 = vmatprep.subr.mxu0 0.0
        %828 = vmatpush2.xpose.msra.mxu0 0.0
        %829 = vmatprep.subr.mxu0 0.0
        %830 = vmatpush2.xpose.msra.mxu0 0.0
        %831 = vmatprep.subr.mxu0 0.0
        %832 = vmatpush2.xpose.msra.mxu0 0.0
        %833 = vmatprep.subr.mxu0 0.0
        %834 = vmatpush2.xpose.msra.mxu0 0.0
        %835 = vmatprep.subr.mxu0 0.0
        %836 = vmatpush2.xpose.msra.mxu0 0.0
        %837 = vmatprep.subr.mxu0 0.0
        %838 = vmatpush2.xpose.msra.mxu0 0.0
        %839 = vmatprep.subr.mxu0 0.0
        %840 = vmatpush2.xpose.msra.mxu0 0.0
        %841 = vmatprep.subr.mxu0 0.0
        %842 = vmatpush2.xpose.msra.mxu0 0.0
        %843 = vmatprep.subr.mxu0 0.0
        %844 = vmatpush2.xpose.msra.mxu0 0.0
        %845 = vmatprep.subr.mxu0 0.0
        %846 = vmatpush2.xpose.msra.mxu0 0.0
        %847 = vmatprep.subr.mxu0 0.0
        %848 = vmatpush2.xpose.msra.mxu0 0.0
        %849 = vmatprep.mubr.f32.mxu0 0.0
        %850 = vmatmul.mubr.f32.gmra.mxu0 %v777
        %v851 = vpop.f32.mrf.mxu0
        %v852 = vadd.f32 0.0, %v851
        %v853 = vpop.f32.mrf.mxu0
        %854 = vdwg.mxu0
        %v855 = vlaneseq
        %v856 = vshrl.u32 %v855, 7
        %v857 = vsub.s32 0, %v856
        %v858 = vrot.slane %v852, %v857
        %861 = vbcast.lane.b32.xlu0 %v858, 256
        %v862 = vpop.permute.xlu0 %861
        %s864 = sor.u32 256, 8
        %865 = vbcast.lane.b32.xlu0 %v858, %s864
        %v866 = vpop.permute.xlu0 %865
        %v869 = vadd.f32 %v730, %v862
        %v870 = vadd.f32 %v733, %v866
        %v871 = vadd.f32 %v736, %v862
        %v872 = vadd.f32 %v739, %v866
        %v873 = vadd.f32 %v742, %v862
        %v874 = vadd.f32 %v745, %v866
        %v875 = vadd.f32 %v748, %v862
        %v876 = vadd.f32 %v751, %v866
        %v877 = vadd.f32 %v754, %v862
        %v878 = vadd.f32 %v757, %v866
        %v879 = vadd.f32 %v760, %v862
        %v880 = vadd.f32 %v763, %v866
        %v881 = vadd.f32 %v766, %v862
        %v882 = vadd.f32 %v769, %v866
        %v883 = vadd.f32 %v772, %v862
        %v884 = vadd.f32 %v775, %v866
        %901 = vset.pattern.permute.xlu0 0
        %902 = vperm.xlu0 %901, %v869
        %v903 = vpop.permute.xlu0 %902
        %904 = vset.pattern.permute.xlu0 0
        %905 = vperm.xlu0 %904, %v870
        %v906 = vpop.permute.xlu0 %905
        %907 = vset.pattern.permute.xlu0 0
        %908 = vperm.xlu0 %907, %v871
        %v909 = vpop.permute.xlu0 %908
        %910 = vset.pattern.permute.xlu0 0
        %911 = vperm.xlu0 %910, %v872
        %v912 = vpop.permute.xlu0 %911
        %913 = vset.pattern.permute.xlu0 0
        %914 = vperm.xlu0 %913, %v873
        %v915 = vpop.permute.xlu0 %914
        %916 = vset.pattern.permute.xlu0 0
        %917 = vperm.xlu0 %916, %v874
        %v918 = vpop.permute.xlu0 %917
        %919 = vset.pattern.permute.xlu0 0
        %920 = vperm.xlu0 %919, %v875
        %v921 = vpop.permute.xlu0 %920
        %922 = vset.pattern.permute.xlu0 0
        %923 = vperm.xlu0 %922, %v876
        %v924 = vpop.permute.xlu0 %923
        %925 = vset.pattern.permute.xlu0 0
        %926 = vperm.xlu0 %925, %v877
        %v927 = vpop.permute.xlu0 %926
        %928 = vset.pattern.permute.xlu0 0
        %929 = vperm.xlu0 %928, %v878
        %v930 = vpop.permute.xlu0 %929
        %931 = vset.pattern.permute.xlu0 0
        %932 = vperm.xlu0 %931, %v879
        %v933 = vpop.permute.xlu0 %932
        %934 = vset.pattern.permute.xlu0 0
        %935 = vperm.xlu0 %934, %v880
        %v936 = vpop.permute.xlu0 %935
        %937 = vset.pattern.permute.xlu0 0
        %938 = vperm.xlu0 %937, %v881
        %v939 = vpop.permute.xlu0 %938
        %940 = vset.pattern.permute.xlu0 0
        %941 = vperm.xlu0 %940, %v882
        %v942 = vpop.permute.xlu0 %941
        %943 = vset.pattern.permute.xlu0 0
        %944 = vperm.xlu0 %943, %v883
        %v945 = vpop.permute.xlu0 %944
        %946 = vset.pattern.permute.xlu0 0
        %947 = vperm.xlu0 %946, %v884
        %v948 = vpop.permute.xlu0 %947
        %v949 = vlaneseq
        %v950 = vand.u32 %v949, 127
        %v951 = vlaneseq
        %v952 = vshrl.u32 %v951, 7
        %v953 = vsub.s32 %v950, %v952
        %v954 = vrot.slane %v903, %v953
        %v955 = vadd.s32 %v950, 4294967288
        %v956 = vlaneseq
        %v957 = vshrl.u32 %v956, 7
        %v958 = vsub.s32 %v955, %v957
        %v959 = vrot.slane %v906, %v958
        %vm960 = vcmask 130112
        %v961 = vsel %vm960, %v959, %v954
        %v962 = vlaneseq
        %v963 = vshrl.u32 %v962, 7
        %v964 = vsub.s32 %v950, %v963
        %v965 = vrot.slane %v909, %v964
        %v966 = vlaneseq
        %v967 = vshrl.u32 %v966, 7
        %v968 = vsub.s32 %v955, %v967
        %v969 = vrot.slane %v912, %v968
        %v970 = vsel %vm960, %v969, %v965
        %v971 = vlaneseq
        %v972 = vshrl.u32 %v971, 7
        %v973 = vsub.s32 %v950, %v972
        %v974 = vrot.slane %v915, %v973
        %v975 = vlaneseq
        %v976 = vshrl.u32 %v975, 7
        %v977 = vsub.s32 %v955, %v976
        %v978 = vrot.slane %v918, %v977
        %v979 = vsel %vm960, %v978, %v974
        %v980 = vlaneseq
        %v981 = vshrl.u32 %v980, 7
        %v982 = vsub.s32 %v950, %v981
        %v983 = vrot.slane %v921, %v982
        %v984 = vlaneseq
        %v985 = vshrl.u32 %v984, 7
        %v986 = vsub.s32 %v955, %v985
        %v987 = vrot.slane %v924, %v986
        %v988 = vsel %vm960, %v987, %v983
        %v989 = vlaneseq
        %v990 = vshrl.u32 %v989, 7
        %v991 = vsub.s32 %v950, %v990
        %v992 = vrot.slane %v927, %v991
        %v993 = vlaneseq
        %v994 = vshrl.u32 %v993, 7
        %v995 = vsub.s32 %v955, %v994
        %v996 = vrot.slane %v930, %v995
        %v997 = vsel %vm960, %v996, %v992
        %v998 = vlaneseq
        %v999 = vshrl.u32 %v998, 7
        %v1000 = vsub.s32 %v950, %v999
        %v1001 = vrot.slane %v933, %v1000
        %v1002 = vlaneseq
        %v1003 = vshrl.u32 %v1002, 7
        %v1004 = vsub.s32 %v955, %v1003
        %v1005 = vrot.slane %v936, %v1004
        %v1006 = vsel %vm960, %v1005, %v1001
        %v1007 = vlaneseq
        %v1008 = vshrl.u32 %v1007, 7
        %v1009 = vsub.s32 %v950, %v1008
        %v1010 = vrot.slane %v939, %v1009
        %v1011 = vlaneseq
        %v1012 = vshrl.u32 %v1011, 7
        %v1013 = vsub.s32 %v955, %v1012
        %v1014 = vrot.slane %v942, %v1013
        %v1015 = vsel %vm960, %v1014, %v1010
        %v1016 = vlaneseq
        %v1017 = vshrl.u32 %v1016, 7
        %v1018 = vsub.s32 %v950, %v1017
        %v1019 = vrot.slane %v945, %v1018
        %v1020 = vlaneseq
        %v1021 = vshrl.u32 %v1020, 7
        %v1022 = vsub.s32 %v955, %v1021
        %v1023 = vrot.slane %v948, %v1022
        %v1024 = vsel %vm960, %v1023, %v1019
        %vm1025 = vcmask 1041409
        %v1026 = vsel %vm1025, %v970, %v961
        %vm1027 = vcmask 1042434
        %v1028 = vsel %vm1027, %v979, %v1026
        %vm1029 = vcmask 1043459
        %v1030 = vsel %vm1029, %v988, %v1028
        %vm1031 = vcmask 1044484
        %v1032 = vsel %vm1031, %v997, %v1030
        %vm1033 = vcmask 1045509
        %v1034 = vsel %vm1033, %v1006, %v1032
        %vm1035 = vcmask 1046534
        %v1036 = vsel %vm1035, %v1015, %v1034
        %vm1037 = vcmask 1047559
        %v1038 = vsel %vm1037, %v1024, %v1036
        %vm1040 = vcmask 130048
        %v1041 = vsel %vm1040, %v1038, -inf
        %1042 = vmax.xlane.f32.xlu0 %v1041
        %v1043 = vpop.xlane.xlu0 %1042
        %v1045 = vlaneseq
        %v1046 = vshrl.u32 %v1045, 7
        %v1047 = vsub.s32 0, %v1046
        %v1048 = vrot.slane %v1043, %v1047
        %v1049 = vlaneseq
        %v1050 = vshrl.u32 %v1049, 7
        %v1051 = vsub.s32 1, %v1050
        %v1052 = vrot.slane %v1043, %v1051
        %v1053 = vlaneseq
        %v1054 = vshrl.u32 %v1053, 7
        %v1055 = vsub.s32 2, %v1054
        %v1056 = vrot.slane %v1043, %v1055
        %v1057 = vlaneseq
        %v1058 = vshrl.u32 %v1057, 7
        %v1059 = vsub.s32 3, %v1058
        %v1060 = vrot.slane %v1043, %v1059
        %v1061 = vlaneseq
        %v1062 = vshrl.u32 %v1061, 7
        %v1063 = vsub.s32 4, %v1062
        %v1064 = vrot.slane %v1043, %v1063
        %v1065 = vlaneseq
        %v1066 = vshrl.u32 %v1065, 7
        %v1067 = vsub.s32 5, %v1066
        %v1068 = vrot.slane %v1043, %v1067
        %v1069 = vlaneseq
        %v1070 = vshrl.u32 %v1069, 7
        %v1071 = vsub.s32 6, %v1070
        %v1072 = vrot.slane %v1043, %v1071
        %v1073 = vlaneseq
        %v1074 = vshrl.u32 %v1073, 7
        %v1075 = vsub.s32 7, %v1074
        %v1076 = vrot.slane %v1043, %v1075
        %v1085 = vsub.f32 %v869, %v1048
        %v1086 = vsub.f32 %v870, %v1048
        %v1087 = vsub.f32 %v871, %v1052
        %v1088 = vsub.f32 %v872, %v1052
        %v1089 = vsub.f32 %v873, %v1056
        %v1090 = vsub.f32 %v874, %v1056
        %v1091 = vsub.f32 %v875, %v1060
        %v1092 = vsub.f32 %v876, %v1060
        %v1093 = vsub.f32 %v877, %v1064
        %v1094 = vsub.f32 %v878, %v1064
        %v1095 = vsub.f32 %v879, %v1068
        %v1096 = vsub.f32 %v880, %v1068
        %v1097 = vsub.f32 %v881, %v1072
        %v1098 = vsub.f32 %v882, %v1072
        %v1099 = vsub.f32 %v883, %v1076
        %v1100 = vsub.f32 %v884, %v1076
        %v1101 = vmul.f32 %v1085, 1.442695
        %v1102 = vpow.pop %v1101
        %v1103 = vmul.f32 %v1086, 1.442695
        %v1104 = vpow.pop %v1103
        %v1105 = vmul.f32 %v1087, 1.442695
        %v1106 = vpow.pop %v1105
        %v1107 = vmul.f32 %v1088, 1.442695
        %v1108 = vpow.pop %v1107
        %v1109 = vmul.f32 %v1089, 1.442695
        %v1110 = vpow.pop %v1109
        %v1111 = vmul.f32 %v1090, 1.442695
        %v1112 = vpow.pop %v1111
        %v1113 = vmul.f32 %v1091, 1.442695
        %v1114 = vpow.pop %v1113
        %v1115 = vmul.f32 %v1092, 1.442695
        %v1116 = vpow.pop %v1115
        %v1117 = vmul.f32 %v1093, 1.442695
        %v1118 = vpow.pop %v1117
        %v1119 = vmul.f32 %v1094, 1.442695
        %v1120 = vpow.pop %v1119
        %v1121 = vmul.f32 %v1095, 1.442695
        %v1122 = vpow.pop %v1121
        %v1123 = vmul.f32 %v1096, 1.442695
        %v1124 = vpow.pop %v1123
        %v1125 = vmul.f32 %v1097, 1.442695
        %v1126 = vpow.pop %v1125
        %v1127 = vmul.f32 %v1098, 1.442695
        %v1128 = vpow.pop %v1127
        %v1129 = vmul.f32 %v1099, 1.442695
        %v1130 = vpow.pop %v1129
        %v1131 = vmul.f32 %v1100, 1.442695
        %v1132 = vpow.pop %v1131
        %1149 = vset.pattern.permute.xlu0 0
        %1150 = vperm.xlu0 %1149, %v1102
        %v1151 = vpop.permute.xlu0 %1150
        %1152 = vset.pattern.permute.xlu0 0
        %1153 = vperm.xlu0 %1152, %v1104
        %v1154 = vpop.permute.xlu0 %1153
        %1155 = vset.pattern.permute.xlu0 0
        %1156 = vperm.xlu0 %1155, %v1106
        %v1157 = vpop.permute.xlu0 %1156
        %1158 = vset.pattern.permute.xlu0 0
        %1159 = vperm.xlu0 %1158, %v1108
        %v1160 = vpop.permute.xlu0 %1159
        %1161 = vset.pattern.permute.xlu0 0
        %1162 = vperm.xlu0 %1161, %v1110
        %v1163 = vpop.permute.xlu0 %1162
        %1164 = vset.pattern.permute.xlu0 0
        %1165 = vperm.xlu0 %1164, %v1112
        %v1166 = vpop.permute.xlu0 %1165
        %1167 = vset.pattern.permute.xlu0 0
        %1168 = vperm.xlu0 %1167, %v1114
        %v1169 = vpop.permute.xlu0 %1168
        %1170 = vset.pattern.permute.xlu0 0
        %1171 = vperm.xlu0 %1170, %v1116
        %v1172 = vpop.permute.xlu0 %1171
        %1173 = vset.pattern.permute.xlu0 0
        %1174 = vperm.xlu0 %1173, %v1118
        %v1175 = vpop.permute.xlu0 %1174
        %1176 = vset.pattern.permute.xlu0 0
        %1177 = vperm.xlu0 %1176, %v1120
        %v1178 = vpop.permute.xlu0 %1177
        %1179 = vset.pattern.permute.xlu0 0
        %1180 = vperm.xlu0 %1179, %v1122
        %v1181 = vpop.permute.xlu0 %1180
        %1182 = vset.pattern.permute.xlu0 0
        %1183 = vperm.xlu0 %1182, %v1124
        %v1184 = vpop.permute.xlu0 %1183
        %1185 = vset.pattern.permute.xlu0 0
        %1186 = vperm.xlu0 %1185, %v1126
        %v1187 = vpop.permute.xlu0 %1186
        %1188 = vset.pattern.permute.xlu0 0
        %1189 = vperm.xlu0 %1188, %v1128
        %v1190 = vpop.permute.xlu0 %1189
        %1191 = vset.pattern.permute.xlu0 0
        %1192 = vperm.xlu0 %1191, %v1130
        %v1193 = vpop.permute.xlu0 %1192
        %1194 = vset.pattern.permute.xlu0 0
        %1195 = vperm.xlu0 %1194, %v1132
        %v1196 = vpop.permute.xlu0 %1195
        %v1197 = vlaneseq
        %v1198 = vshrl.u32 %v1197, 7
        %v1199 = vsub.s32 %v950, %v1198
        %v1200 = vrot.slane %v1151, %v1199
        %v1201 = vlaneseq
        %v1202 = vshrl.u32 %v1201, 7
        %v1203 = vsub.s32 %v955, %v1202
        %v1204 = vrot.slane %v1154, %v1203
        %v1205 = vsel %vm960, %v1204, %v1200
        %v1206 = vlaneseq
        %v1207 = vshrl.u32 %v1206, 7
        %v1208 = vsub.s32 %v950, %v1207
        %v1209 = vrot.slane %v1157, %v1208
        %v1210 = vlaneseq
        %v1211 = vshrl.u32 %v1210, 7
        %v1212 = vsub.s32 %v955, %v1211
        %v1213 = vrot.slane %v1160, %v1212
        %v1214 = vsel %vm960, %v1213, %v1209
        %v1215 = vlaneseq
        %v1216 = vshrl.u32 %v1215, 7
        %v1217 = vsub.s32 %v950, %v1216
        %v1218 = vrot.slane %v1163, %v1217
        %v1219 = vlaneseq
        %v1220 = vshrl.u32 %v1219, 7
        %v1221 = vsub.s32 %v955, %v1220
        %v1222 = vrot.slane %v1166, %v1221
        %v1223 = vsel %vm960, %v1222, %v1218
        %v1224 = vlaneseq
        %v1225 = vshrl.u32 %v1224, 7
        %v1226 = vsub.s32 %v950, %v1225
        %v1227 = vrot.slane %v1169, %v1226
        %v1228 = vlaneseq
        %v1229 = vshrl.u32 %v1228, 7
        %v1230 = vsub.s32 %v955, %v1229
        %v1231 = vrot.slane %v1172, %v1230
        %v1232 = vsel %vm960, %v1231, %v1227
        %v1233 = vlaneseq
        %v1234 = vshrl.u32 %v1233, 7
        %v1235 = vsub.s32 %v950, %v1234
        %v1236 = vrot.slane %v1175, %v1235
        %v1237 = vlaneseq
        %v1238 = vshrl.u32 %v1237, 7
        %v1239 = vsub.s32 %v955, %v1238
        %v1240 = vrot.slane %v1178, %v1239
        %v1241 = vsel %vm960, %v1240, %v1236
        %v1242 = vlaneseq
        %v1243 = vshrl.u32 %v1242, 7
        %v1244 = vsub.s32 %v950, %v1243
        %v1245 = vrot.slane %v1181, %v1244
        %v1246 = vlaneseq
        %v1247 = vshrl.u32 %v1246, 7
        %v1248 = vsub.s32 %v955, %v1247
        %v1249 = vrot.slane %v1184, %v1248
        %v1250 = vsel %vm960, %v1249, %v1245
        %v1251 = vlaneseq
        %v1252 = vshrl.u32 %v1251, 7
        %v1253 = vsub.s32 %v950, %v1252
        %v1254 = vrot.slane %v1187, %v1253
        %v1255 = vlaneseq
        %v1256 = vshrl.u32 %v1255, 7
        %v1257 = vsub.s32 %v955, %v1256
        %v1258 = vrot.slane %v1190, %v1257
        %v1259 = vsel %vm960, %v1258, %v1254
        %v1260 = vlaneseq
        %v1261 = vshrl.u32 %v1260, 7
        %v1262 = vsub.s32 %v950, %v1261
        %v1263 = vrot.slane %v1193, %v1262
        %v1264 = vlaneseq
        %v1265 = vshrl.u32 %v1264, 7
        %v1266 = vsub.s32 %v955, %v1265
        %v1267 = vrot.slane %v1196, %v1266
        %v1268 = vsel %vm960, %v1267, %v1263
        %v1269 = vsel %vm1025, %v1214, %v1205
        %v1270 = vsel %vm1027, %v1223, %v1269
        %v1271 = vsel %vm1029, %v1232, %v1270
        %v1272 = vsel %vm1031, %v1241, %v1271
        %v1273 = vsel %vm1033, %v1250, %v1272
        %v1274 = vsel %vm1035, %v1259, %v1273
        %v1275 = vsel %vm1037, %v1268, %v1274
        %v1277 = vsel %vm1040, %v1275, 0.0
        %1278 = vadd.xlane.f32.xlu0 %v1277
        %v1279 = vpop.xlane.xlu0 %1278
        %v1280 = vrcp.pop %v1279
        %v1282 = vlaneseq
        %v1283 = vshrl.u32 %v1282, 7
        %v1284 = vsub.s32 0, %v1283
        %v1285 = vrot.slane %v1280, %v1284
        %v1286 = vlaneseq
        %v1287 = vshrl.u32 %v1286, 7
        %v1288 = vsub.s32 1, %v1287
        %v1289 = vrot.slane %v1280, %v1288
        %v1290 = vlaneseq
        %v1291 = vshrl.u32 %v1290, 7
        %v1292 = vsub.s32 2, %v1291
        %v1293 = vrot.slane %v1280, %v1292
        %v1294 = vlaneseq
        %v1295 = vshrl.u32 %v1294, 7
        %v1296 = vsub.s32 3, %v1295
        %v1297 = vrot.slane %v1280, %v1296
        %v1298 = vlaneseq
        %v1299 = vshrl.u32 %v1298, 7
        %v1300 = vsub.s32 4, %v1299
        %v1301 = vrot.slane %v1280, %v1300
        %v1302 = vlaneseq
        %v1303 = vshrl.u32 %v1302, 7
        %v1304 = vsub.s32 5, %v1303
        %v1305 = vrot.slane %v1280, %v1304
        %v1306 = vlaneseq
        %v1307 = vshrl.u32 %v1306, 7
        %v1308 = vsub.s32 6, %v1307
        %v1309 = vrot.slane %v1280, %v1308
        %v1310 = vlaneseq
        %v1311 = vshrl.u32 %v1310, 7
        %v1312 = vsub.s32 7, %v1311
        %v1313 = vrot.slane %v1280, %v1312
        %v1322 = vmul.f32 %v1102, %v1285
        %v1323 = vmul.f32 %v1104, %v1285
        %v1324 = vmul.f32 %v1106, %v1289
        %v1325 = vmul.f32 %v1108, %v1289
        %v1326 = vmul.f32 %v1110, %v1293
        %v1327 = vmul.f32 %v1112, %v1293
        %v1328 = vmul.f32 %v1114, %v1297
        %v1329 = vmul.f32 %v1116, %v1297
        %v1330 = vmul.f32 %v1118, %v1301
        %v1331 = vmul.f32 %v1120, %v1301
        %v1332 = vmul.f32 %v1122, %v1305
        %v1333 = vmul.f32 %v1124, %v1305
        %v1334 = vmul.f32 %v1126, %v1309
        %v1335 = vmul.f32 %v1128, %v1309
        %v1336 = vmul.f32 %v1130, %v1313
        %v1337 = vmul.f32 %v1132, %v1313
        %1354 = vset.pattern.permute.xlu0 0
        %1355 = vperm.xlu0 %1354, %v1322
        %v1356 = vpop.permute.xlu0 %1355
        %1357 = vset.pattern.permute.xlu0 0
        %1358 = vperm.xlu0 %1357, %v1323
        %v1359 = vpop.permute.xlu0 %1358
        %1360 = vset.pattern.permute.xlu0 0
        %1361 = vperm.xlu0 %1360, %v1324
        %v1362 = vpop.permute.xlu0 %1361
        %1363 = vset.pattern.permute.xlu0 0
        %1364 = vperm.xlu0 %1363, %v1325
        %v1365 = vpop.permute.xlu0 %1364
        %1366 = vset.pattern.permute.xlu0 0
        %1367 = vperm.xlu0 %1366, %v1326
        %v1368 = vpop.permute.xlu0 %1367
        %1369 = vset.pattern.permute.xlu0 0
        %1370 = vperm.xlu0 %1369, %v1327
        %v1371 = vpop.permute.xlu0 %1370
        %1372 = vset.pattern.permute.xlu0 0
        %1373 = vperm.xlu0 %1372, %v1328
        %v1374 = vpop.permute.xlu0 %1373
        %1375 = vset.pattern.permute.xlu0 0
        %1376 = vperm.xlu0 %1375, %v1329
        %v1377 = vpop.permute.xlu0 %1376
        %1378 = vset.pattern.permute.xlu0 0
        %1379 = vperm.xlu0 %1378, %v1330
        %v1380 = vpop.permute.xlu0 %1379
        %1381 = vset.pattern.permute.xlu0 0
        %1382 = vperm.xlu0 %1381, %v1331
        %v1383 = vpop.permute.xlu0 %1382
        %1384 = vset.pattern.permute.xlu0 0
        %1385 = vperm.xlu0 %1384, %v1332
        %v1386 = vpop.permute.xlu0 %1385
        %1387 = vset.pattern.permute.xlu0 0
        %1388 = vperm.xlu0 %1387, %v1333
        %v1389 = vpop.permute.xlu0 %1388
        %1390 = vset.pattern.permute.xlu0 0
        %1391 = vperm.xlu0 %1390, %v1334
        %v1392 = vpop.permute.xlu0 %1391
        %1393 = vset.pattern.permute.xlu0 0
        %1394 = vperm.xlu0 %1393, %v1335
        %v1395 = vpop.permute.xlu0 %1394
        %1396 = vset.pattern.permute.xlu0 0
        %1397 = vperm.xlu0 %1396, %v1336
        %v1398 = vpop.permute.xlu0 %1397
        %1399 = vset.pattern.permute.xlu0 0
        %1400 = vperm.xlu0 %1399, %v1337
        %v1401 = vpop.permute.xlu0 %1400
        %v1402 = vlaneseq
        %v1403 = vshrl.u32 %v1402, 7
        %v1404 = vsub.s32 %v950, %v1403
        %v1405 = vrot.slane %v1356, %v1404
        %v1406 = vlaneseq
        %v1407 = vshrl.u32 %v1406, 7
        %v1408 = vsub.s32 %v955, %v1407
        %v1409 = vrot.slane %v1359, %v1408
        %v1410 = vsel %vm960, %v1409, %v1405
        %v1411 = vlaneseq
        %v1412 = vshrl.u32 %v1411, 7
        %v1413 = vsub.s32 %v950, %v1412
        %v1414 = vrot.slane %v1362, %v1413
        %v1415 = vlaneseq
        %v1416 = vshrl.u32 %v1415, 7
        %v1417 = vsub.s32 %v955, %v1416
        %v1418 = vrot.slane %v1365, %v1417
        %v1419 = vsel %vm960, %v1418, %v1414
        %v1420 = vlaneseq
        %v1421 = vshrl.u32 %v1420, 7
        %v1422 = vsub.s32 %v950, %v1421
        %v1423 = vrot.slane %v1368, %v1422
        %v1424 = vlaneseq
        %v1425 = vshrl.u32 %v1424, 7
        %v1426 = vsub.s32 %v955, %v1425
        %v1427 = vrot.slane %v1371, %v1426
        %v1428 = vsel %vm960, %v1427, %v1423
        %v1429 = vlaneseq
        %v1430 = vshrl.u32 %v1429, 7
        %v1431 = vsub.s32 %v950, %v1430
        %v1432 = vrot.slane %v1374, %v1431
        %v1433 = vlaneseq
        %v1434 = vshrl.u32 %v1433, 7
        %v1435 = vsub.s32 %v955, %v1434
        %v1436 = vrot.slane %v1377, %v1435
        %v1437 = vsel %vm960, %v1436, %v1432
        %v1438 = vlaneseq
        %v1439 = vshrl.u32 %v1438, 7
        %v1440 = vsub.s32 %v950, %v1439
        %v1441 = vrot.slane %v1380, %v1440
        %v1442 = vlaneseq
        %v1443 = vshrl.u32 %v1442, 7
        %v1444 = vsub.s32 %v955, %v1443
        %v1445 = vrot.slane %v1383, %v1444
        %v1446 = vsel %vm960, %v1445, %v1441
        %v1447 = vlaneseq
        %v1448 = vshrl.u32 %v1447, 7
        %v1449 = vsub.s32 %v950, %v1448
        %v1450 = vrot.slane %v1386, %v1449
        %v1451 = vlaneseq
        %v1452 = vshrl.u32 %v1451, 7
        %v1453 = vsub.s32 %v955, %v1452
        %v1454 = vrot.slane %v1389, %v1453
        %v1455 = vsel %vm960, %v1454, %v1450
        %v1456 = vlaneseq
        %v1457 = vshrl.u32 %v1456, 7
        %v1458 = vsub.s32 %v950, %v1457
        %v1459 = vrot.slane %v1392, %v1458
        %v1460 = vlaneseq
        %v1461 = vshrl.u32 %v1460, 7
        %v1462 = vsub.s32 %v955, %v1461
        %v1463 = vrot.slane %v1395, %v1462
        %v1464 = vsel %vm960, %v1463, %v1459
        %v1465 = vlaneseq
        %v1466 = vshrl.u32 %v1465, 7
        %v1467 = vsub.s32 %v950, %v1466
        %v1468 = vrot.slane %v1398, %v1467
        %v1469 = vlaneseq
        %v1470 = vshrl.u32 %v1469, 7
        %v1471 = vsub.s32 %v955, %v1470
        %v1472 = vrot.slane %v1401, %v1471
        %v1473 = vsel %vm960, %v1472, %v1468
        %v1474 = vsel %vm1025, %v1419, %v1410
        %v1475 = vsel %vm1027, %v1428, %v1474
        %v1476 = vsel %vm1029, %v1437, %v1475
        %v1477 = vsel %vm1031, %v1446, %v1476
        %v1478 = vsel %vm1033, %v1455, %v1477
        %v1479 = vsel %vm1035, %v1464, %v1478
        %v1480 = vsel %vm1037, %v1473, %v1479
        %1482 = vst.msk [vmem:[%s400] sm:$0xff] %vm1040, %v1480
        %v1483 = vsel %vm1040, %v1480, 0
        %1485 = vmatprep.subr.mxu0 0.0
        %1486 = vmatpush1.msra.mxu0 0.0
        %1487 = vmatprep.subr.mxu0 0.0
        %1488 = vmatpush1.msra.mxu0 0.0
        %1489 = vmatprep.subr.mxu0 0.0
        %1490 = vmatpush1.msra.mxu0 0.0
        %1491 = vmatprep.subr.mxu0 0.0
        %1492 = vmatpush1.msra.mxu0 0.0
        %1493 = vmatprep.subr.mxu0 0.0
        %1494 = vmatpush1.msra.mxu0 0.0
        %1495 = vmatprep.subr.mxu0 0.0
        %1496 = vmatpush1.msra.mxu0 0.0
        %1497 = vmatprep.subr.mxu0 0.0
        %1498 = vmatpush1.msra.mxu0 0.0
        %1499 = vmatprep.subr.mxu0 0.0
        %1500 = vmatpush1.msra.mxu0 0.0
        %1501 = vmatprep.subr.mxu0 0.0
        %1502 = vmatpush1.msra.mxu0 0.0
        %1503 = vmatprep.subr.mxu0 0.0
        %1504 = vmatpush1.msra.mxu0 0.0
        %1505 = vmatprep.subr.mxu0 0.0
        %1506 = vmatpush1.msra.mxu0 0.0
        %1507 = vmatprep.subr.mxu0 0.0
        %1508 = vmatpush1.msra.mxu0 0.0
        %1509 = vmatprep.subr.mxu0 0.0
        %1510 = vmatpush1.msra.mxu0 0.0
        %1511 = vmatprep.subr.mxu0 0.0
        %1512 = vmatpush1.msra.mxu0 0.0
        %1513 = vmatprep.subr.mxu0 0.0
        %1514 = vmatpush1.msra.mxu0 %v583
        %1515 = vmatprep.subr.mxu0 0.0
        %1516 = vmatpush1.msra.mxu0 %v582
        %1517 = vmatprep.subr.mxu0 0.0
        %1518 = vmatpush2.msra.mxu0 0.0
        %1519 = vmatprep.subr.mxu0 0.0
        %1520 = vmatpush2.msra.mxu0 0.0
        %1521 = vmatprep.subr.mxu0 0.0
        %1522 = vmatpush2.msra.mxu0 0.0
        %1523 = vmatprep.subr.mxu0 0.0
        %1524 = vmatpush2.msra.mxu0 0.0
        %1525 = vmatprep.subr.mxu0 0.0
        %1526 = vmatpush2.msra.mxu0 0.0
        %1527 = vmatprep.subr.mxu0 0.0
        %1528 = vmatpush2.msra.mxu0 0.0
        %1529 = vmatprep.subr.mxu0 0.0
        %1530 = vmatpush2.msra.mxu0 0.0
        %1531 = vmatprep.subr.mxu0 0.0
        %1532 = vmatpush2.msra.mxu0 0.0
        %1533 = vmatprep.subr.mxu0 0.0
        %1534 = vmatpush2.msra.mxu0 0.0
        %1535 = vmatprep.subr.mxu0 0.0
        %1536 = vmatpush2.msra.mxu0 0.0
        %1537 = vmatprep.subr.mxu0 0.0
        %1538 = vmatpush2.msra.mxu0 0.0
        %1539 = vmatprep.subr.mxu0 0.0
        %1540 = vmatpush2.msra.mxu0 0.0
        %1541 = vmatprep.subr.mxu0 0.0
        %1542 = vmatpush2.msra.mxu0 0.0
        %1543 = vmatprep.subr.mxu0 0.0
        %1544 = vmatpush2.msra.mxu0 0.0
        %1545 = vmatprep.subr.mxu0 0.0
        %1546 = vmatpush2.msra.mxu0 0.0
        %1547 = vmatprep.subr.mxu0 0.0
        %1548 = vmatpush2.msra.mxu0 0.0
        %1549 = vmatprep.mubr.f32.mxu0 0.0
        %1550 = vmatmul.mubr.f32.gmra.mxu0 %v1483
        %v1551 = vpop.f32.mrf.mxu0
        %v1552 = vadd.f32 0.0, %v1551
        %v1553 = vpop.f32.mrf.mxu0
        %1554 = vdwg.mxu0
        %1555 = vst.msk [vmem:[%s393] sm:$0xff] %vm413, %v1552
        %s1556 = sand.u32 %s198, 1
        %s1557 = scalar_lea.sflag [#allocation6], %s1556
        %s1558 = sand.u32 %s198, 1
        %s1559 = smul.addr %s1558, 8
        %s1560 = scalar_lea.vmem [#allocation12], %s1559
        %s1561 = sand.u32 %s224, 1
        %s1562 = scalar_lea.sflag [#allocation14], %s1561
        %s1563 = sand.u32 %s224, 1
        %s1564 = smul.addr %s1563, 8
        %s1565 = scalar_lea.vmem [#allocation13], %s1564
        // Predicated region
        $region65: #{tpu_custom_call.1} parent=47 // pred_check
          %p1566 = pneg %p208
        $region66: #{tpu_custom_call.1} parent=47 // pred_check_branch
          %1568 = sbr.rel (%p1566) target = $region68
        $region67: #{tpu_custom_call.1} parent=47 // pred_region
          %s1570 = ssub.s32 128, 128
          %1571 = vsyncadd %s1557, %s1570
          %s1572 = smul.addr %s33, 128
          %s1573 = scalar_lea.hbm %s7, %s1572
          %s1575 = sshll.u32 %s1560, 4
          %s1576 = int_to_ptr.vmem [resolvable:$true] %s1575
          %1578 = dma.vmem_to_hbm [thread:$0]  %s1576, 128, %s1573, %s1557
        $region68: #{tpu_custom_call.1} parent=47 // pred_fallthru
          _
        // Predicated region
        $region69: #{tpu_custom_call.1} parent=47 // pred_check
          %p1579 = pneg %p234
        $region70: #{tpu_custom_call.1} parent=47 // pred_check_branch
          %1581 = sbr.rel (%p1579) target = $region72
        $region71: #{tpu_custom_call.1} parent=47 // pred_region
          %s1583 = ssub.s32 128, 128
          %1584 = vsyncadd %s1562, %s1583
          %s1585 = smul.addr %s33, 128
          %s1586 = scalar_lea.hbm %s8, %s1585
          %s1588 = sshll.u32 %s1565, 4
          %s1589 = int_to_ptr.vmem [resolvable:$true] %s1588
          %1591 = dma.vmem_to_hbm [thread:$0]  %s1589, 128, %s1586, %s1562
        $region72: #{tpu_custom_call.1} parent=47 // pred_fallthru
          _
      $region48: #{tpu_custom_call.1} parent=5 // pred_fallthru
        _
      %p1592 = scmp.le.s32.totalorder 2, %s28
      // Predicated region
      $region73: #{tpu_custom_call.1} parent=5 // pred_check
        %p1593 = pneg %p1592
      $region74: #{tpu_custom_call.1} parent=5 // pred_check_branch
        %1595 = sbr.rel (%p1593) target = $region76
      $region75: #{tpu_custom_call.1} parent=5 // pred_region
        %s1596 = ssub.s32 %s28, 2
        // Predicated region
        $region77: #{tpu_custom_call.1} parent=75 // pred_check
          %p1597 = pneg %p214
        $region78: #{tpu_custom_call.1} parent=75 // pred_check_branch
          %1599 = sbr.rel (%p1597) target = $region80
        $region79: #{tpu_custom_call.1} parent=75 // pred_region
          %s1600 = sand.u32 %s199, 1
          %s1601 = scalar_lea.sflag [#allocation6], %s1600
          %s1602 = sand.u32 %s199, 1
          %s1603 = smul.addr %s1602, 8
          %s1604 = scalar_lea.vmem [#allocation12], %s1603
          %1605 = dma.done %s1601, 128
        $region80: #{tpu_custom_call.1} parent=75 // pred_fallthru
          _
        // Predicated region
        $region81: #{tpu_custom_call.1} parent=75 // pred_check
          %p1606 = pneg %p240
        $region82: #{tpu_custom_call.1} parent=75 // pred_check_branch
          %1608 = sbr.rel (%p1606) target = $region84
        $region83: #{tpu_custom_call.1} parent=75 // pred_region
          %s1609 = sand.u32 %s225, 1
          %s1610 = scalar_lea.sflag [#allocation14], %s1609
          %s1611 = sand.u32 %s225, 1
          %s1612 = smul.addr %s1611, 8
          %s1613 = scalar_lea.vmem [#allocation13], %s1612
          %1614 = dma.done %s1610, 128
        $region84: #{tpu_custom_call.1} parent=75 // pred_fallthru
          _
      $region76: #{tpu_custom_call.1} parent=5 // pred_fallthru
        _
    $region6: #{tpu_custom_call.1} parent=1 // loop_footer
      %s32 = sadd.s32 1, %s28
    $region7: #{tpu_custom_call.1} parent=1 // loop_footer_branch
      %27 = sbr.rel target = $region3
    $region8: #{tpu_custom_call.1} parent=1 // loop_exit
      _
    %1615 = vsyncpa [#allocation5], 1
    %s1616 = scalar_lea.sflag [#allocation5], 1
    %1617 = vsyncpa %s1616, 1
    %1618 = vsyncpa [#allocation8], 1
    %s1619 = scalar_lea.sflag [#allocation8], 1
    %1620 = vsyncpa %s1619, 1
    %1621 = vsyncpa [#allocation11], 1
    %1622 = vsyncpa [#allocation6], 1
    %s1623 = scalar_lea.sflag [#allocation6], 1
    %1624 = vsyncpa %s1623, 1
    %1625 = vsyncpa [#allocation14], 1
    %s1626 = scalar_lea.sflag [#allocation14], 1
    %1627 = vsyncpa %s1626, 1

</llo_original>
